<compile_context>
chip_gen: v5e
topology: v5e:2x2
jax: 0.10.0
libtpu: 0.0.40
codegen_flags: <defaults>
</compile_context>

<pallas_src>
import functools

import jax
import jax.numpy as jnp
from jax.experimental import pallas as pl
from jax.experimental.pallas import tpu as pltpu

HIDDEN = 64   # module default hidden_layers=64
INPUT = 4     # LSTMCell input size from the module


def lstm_kernel(x_ref, wih_ref, b_ref, whh_ref, wlin_ref, blin_ref, o_ref,
                *, B, T):
    # x_ref:    (T*B, 2*INPUT) f32, time-major rows, features = [x_fwd | x_bwd]
    # wih_ref:  (2*INPUT, 8H)  f32, fused input->gate weights (layout [i|f|o|g])
    # b_ref:    (1, 8H)        f32, fused (b_ih + b_hh) biases, both directions
    # whh_ref:  (2H, 8H)       bf16, block-diagonal recurrent weights
    # wlin_ref: (2H, 4)        f32, four Linear(2H,1) heads fused
    # blin_ref: (1, 4)         f32
    # o_ref:    (B, 4)         f32
    # B is the sublane-padded batch (multiple of 8).
    H2 = whh_ref.shape[0]          # 2H (fwd+bwd hidden = one vreg lane width)

    # Hoisted input projection for both directions and every timestep.
    # Independent of the recurrence -> off the serial critical path.
    xp = (jnp.dot(x_ref[...], wih_ref[...],
                  preferred_element_type=jnp.float32)
          + b_ref[...])                                            # (T*B, 8H)

    h = jnp.zeros((B, H2), jnp.float32)    # [h_f | h_b]
    c = jnp.zeros((B, H2), jnp.float32)    # [c_f | c_b]

    # T is small and static: a plain Python loop fully unrolls the recurrence,
    # keeping every iteration visible to the scheduler; all slice indices are
    # static and (8,128)-tile aligned (B is a multiple of 8, H2 = 128).
    for t in range(T):
        # Re-read the recurrent weights each step (VMEM reload is cheap;
        # pinning 128 KiB of bf16 across the unrolled loop would spill).
        rec = jnp.dot(h.astype(jnp.bfloat16), whh_ref[...],
                      preferred_element_type=jnp.float32)          # (B, 8H)
        gates = xp[t * B:(t + 1) * B, :] + rec
        # Fused gate layout [i | f | o | g]: one sigmoid over the first 3*2H
        # lanes, one tanh over the last 2H lanes -- no iota/select.
        sig = jax.nn.sigmoid(gates[:, 0:3 * H2])                   # (B, 6H)
        g_g = jnp.tanh(gates[:, 3 * H2:4 * H2])                    # (B, 2H)
        i_g = sig[:, 0 * H2:1 * H2]
        f_g = sig[:, 1 * H2:2 * H2]
        o_g = sig[:, 2 * H2:3 * H2]
        c = f_g * c + i_g * g_g
        h = o_g * jnp.tanh(c)

    # h is already [h_f | h_b] == torch.cat((h_tf, h_tb), dim=1).
    logits = (jnp.dot(h, wlin_ref[...], preferred_element_type=jnp.float32)
              + blin_ref[...])
    o_ref[...] = jax.nn.sigmoid(logits)


def fuse_params(params):
    """Build the fused-direction weights used by the kernel.

    Gate-column layout (blocks of size H): [i_f,i_b, f_f,f_b, o_f,o_b, g_f,g_b]
    i.e. gate order [i|f|o|g], so the three sigmoid gates are the contiguous
    first 3*2H lanes and the tanh gate is the last 2H lanes.  Each gate block
    is 2H (=128) lanes: forward direction in the first H lanes, backward in
    the next H.
    """
    H = HIDDEN
    # PyTorch LSTMCell column order is [i|f|g|o]; reorder to [i|f|o|g].
    GATE_ORDER = (0, 1, 3, 2)

    def fuse_cols(wf, wb):
        # wf: (Rf, 4H) cols [i|f|g|o]; wb: (Rb, 4H). Result: (Rf+Rb, 8H),
        # rows 0:Rf only feed forward gate columns, rows Rf: only backward.
        rf, rb = wf.shape[0], wb.shape[0]
        blocks = []
        for g in GATE_ORDER:
            cf = wf[:, g * H:(g + 1) * H]
            cb = wb[:, g * H:(g + 1) * H]
            top = jnp.concatenate([cf, jnp.zeros((rf, H), wf.dtype)], axis=1)
            bot = jnp.concatenate([jnp.zeros((rb, H), wb.dtype), cb], axis=1)
            blocks.append(jnp.concatenate([top, bot], axis=0))     # (Rf+Rb, 2H)
        return jnp.concatenate(blocks, axis=1)                      # (Rf+Rb, 8H)

    wih = fuse_cols(params["wih_f"], params["wih_b"])               # (8, 8H) f32
    whh = fuse_cols(params["whh_f"], params["whh_b"]).astype(jnp.bfloat16)
    b = jnp.concatenate(
        [jnp.concatenate([params["b_f"][:, g * H:(g + 1) * H],
                          params["b_b"][:, g * H:(g + 1) * H]], axis=1)
         for g in GATE_ORDER], axis=1)                              # (1, 8H)
    return {"wih": wih, "whh": whh, "b": b,
            "wlin": params["wlin"], "blin": params["blin"]}


def lstm_forward(y, fused):
    """y: (B, T, 4) float32 (PyTorch layout). Returns (B, 1, 4)."""
    B, T, _ = y.shape
    # Pad batch to a multiple of 8 so every per-step xp slice and the carried
    # h/c state are (8,128)-tile aligned inside the kernel.
    B_pad = max(8, ((B + 7) // 8) * 8)

    # Pair each timestep's forward input with the corresponding time-reversed
    # input so one fused projection covers both directions; time-major rows
    # give contiguous, statically sliceable per-step rows inside the kernel.
    x_all = jnp.concatenate([y, jnp.flip(y, axis=1)], axis=-1)       # (B, T, 8)
    x_tm = jnp.transpose(x_all, (1, 0, 2))                           # (T, B, 8)
    if B_pad != B:
        x_tm = jnp.pad(x_tm, ((0, 0), (0, B_pad - B), (0, 0)))
    x_tm = x_tm.reshape(T * B_pad, 2 * INPUT)                        # (T*B_pad, 8)

    vmem = pl.BlockSpec(memory_space=pltpu.MemorySpace.VMEM)
    kernel = functools.partial(lstm_kernel, B=B_pad, T=T)
    out = pl.pallas_call(
        kernel,
        out_shape=jax.ShapeDtypeStruct((B_pad, 4), jnp.float32),
        in_specs=[vmem] * 6,
        out_specs=vmem,
    )(x_tm, fused["wih"], fused["b"], fused["whh"],
      fused["wlin"], fused["blin"])
    return out[:B, None, :]                                          # (B, 1, 4)


def lstm_reference(y, params):
    """Pure-JAX f32 reference (uses the raw, un-fused parameters)."""
    B, T, _ = y.shape
    H = HIDDEN

    def cell(x, h, c, wih, whh, b):
        gates = x @ wih + h @ whh + b
        i = jax.nn.sigmoid(gates[:, 0 * H:1 * H])
        f = jax.nn.sigmoid(gates[:, 1 * H:2 * H])
        g = jnp.tanh(gates[:, 2 * H:3 * H])
        o = jax.nn.sigmoid(gates[:, 3 * H:4 * H])
        c_new = f * c + i * g
        return o * jnp.tanh(c_new), c_new

    h_f = c_f = h_b = c_b = jnp.zeros((B, H), jnp.float32)
    y_rev = jnp.flip(y, axis=1)
    for t in range(T):
        h_f, c_f = cell(y[:, t, :], h_f, c_f,
                        params["wih_f"], params["whh_f"], params["b_f"])
        h_b, c_b = cell(y_rev[:, t, :], h_b, c_b,
                        params["wih_b"], params["whh_b"], params["b_b"])
    h_cat = jnp.concatenate([h_f, h_b], axis=1)
    out = jax.nn.sigmoid(h_cat @ params["wlin"] + params["blin"])
    return out[:, None, :]


if __name__ == "__main__":
    key = jax.random.PRNGKey(0)
    B, T = 2, 8
    keys = jax.random.split(key, 12)
    k = 1.0 / jnp.sqrt(HIDDEN)

    def u(kk, shape):
        return jax.random.uniform(kk, shape, jnp.float32, -k, k)

    params = {
        # forward LSTMCell (weights pre-transposed, biases combined)
        "wih_f": u(keys[0], (INPUT, 4 * HIDDEN)),
        "whh_f": u(keys[1], (HIDDEN, 4 * HIDDEN)),
        "b_f":   u(keys[2], (1, 4 * HIDDEN)) + u(keys[3], (1, 4 * HIDDEN)),
        # backward LSTMCell
        "wih_b": u(keys[4], (INPUT, 4 * HIDDEN)),
        "whh_b": u(keys[5], (HIDDEN, 4 * HIDDEN)),
        "b_b":   u(keys[6], (1, 4 * HIDDEN)) + u(keys[7], (1, 4 * HIDDEN)),
        # four Linear(2H, 1) heads fused into one (2H, 4) matmul
        "wlin":  u(keys[8], (2 * HIDDEN, 4)),
        "blin":  u(keys[9], (1, 4)),
    }

    y = jax.random.normal(keys[10], (B, T, INPUT), jnp.float32)

    fused = fuse_params(params)
    out = lstm_forward(y, fused)
    jax.block_until_ready(out)
    assert out.shape == (B, 1, 4)

    ref = lstm_reference(y, params)
    assert jnp.allclose(out, ref, rtol=1e-3, atol=1e-3), (
        f"max abs err {jnp.max(jnp.abs(out - ref))}")

    print("KERNEL_OK")
</pallas_src>

<mosaic_0001>
module attributes {stable_mosaic.version = 11 : i64} {
  func.func @lstm_kernel(%arg0: memref<64x8xf32, #tpu.memory_space<vmem>>, %arg1: memref<8x512xf32, #tpu.memory_space<vmem>>, %arg2: memref<1x512xf32, #tpu.memory_space<vmem>>, %arg3: memref<128x512xbf16, #tpu.memory_space<vmem>>, %arg4: memref<128x4xf32, #tpu.memory_space<vmem>>, %arg5: memref<1x4xf32, #tpu.memory_space<vmem>>, %arg6: memref<8x4xf32, #tpu.memory_space<vmem>>) attributes {dimension_semantics = [], scalar_prefetch = 0 : i64, scratch_operands = 0 : i64, tpu.core_type = #tpu.core_type<tc>} {
    %c0 = arith.constant 0 : index
    %c0_0 = arith.constant 0 : index
    %0 = vector.load %arg0[%c0, %c0_0] : memref<64x8xf32, #tpu.memory_space<vmem>>, vector<64x8xf32>
    %c0_1 = arith.constant 0 : index
    %c0_2 = arith.constant 0 : index
    %1 = vector.load %arg1[%c0_1, %c0_2] : memref<8x512xf32, #tpu.memory_space<vmem>>, vector<8x512xf32>
    %cst = arith.constant dense<0.000000e+00> : vector<64x512xf32>
    %2 = tpu.matmul %0, %1, %cst {dimension_numbers = #tpu.dot_dimension_numbers<[1], [0], [0], [1], [0, 0, 1, 1], [], []>} : vector<64x8xf32>, vector<8x512xf32>, vector<64x512xf32> -> vector<64x512xf32>
    %c0_3 = arith.constant 0 : index
    %c0_4 = arith.constant 0 : index
    %3 = vector.load %arg2[%c0_3, %c0_4] : memref<1x512xf32, #tpu.memory_space<vmem>>, vector<1x512xf32>
    %4 = vector.broadcast %3 : vector<1x512xf32> to vector<64x512xf32>
    %5 = arith.addf %2, %4 : vector<64x512xf32>
    %cst_5 = arith.constant 0.000000e+00 : f32
    %6 = vector.broadcast %cst_5 : f32 to vector<8x128xf32>
    %cst_6 = arith.constant 0.000000e+00 : f32
    %7 = vector.broadcast %cst_6 : f32 to vector<8x128xf32>
    %8 = arith.truncf %6 : vector<8x128xf32> to vector<8x128xbf16>
    %c0_7 = arith.constant 0 : index
    %c0_8 = arith.constant 0 : index
    %9 = vector.load %arg3[%c0_7, %c0_8] : memref<128x512xbf16, #tpu.memory_space<vmem>>, vector<128x512xbf16>
    %cst_9 = arith.constant dense<0.000000e+00> : vector<8x512xf32>
    %10 = tpu.matmul %8, %9, %cst_9 {dimension_numbers = #tpu.dot_dimension_numbers<[1], [0], [0], [1], [0, 0, 1, 1], [], []>} : vector<8x128xbf16>, vector<128x512xbf16>, vector<8x512xf32> -> vector<8x512xf32>
    %11 = vector.extract_strided_slice %5 {offsets = [0, 0], sizes = [8, 512], strides = [1, 1]} : vector<64x512xf32> to vector<8x512xf32>
    %12 = arith.addf %11, %10 : vector<8x512xf32>
    %13 = vector.extract_strided_slice %12 {offsets = [0, 0], sizes = [8, 384], strides = [1, 1]} : vector<8x512xf32> to vector<8x384xf32>
    %14 = arith.negf %13 : vector<8x384xf32>
    %15 = math.exp %14 : vector<8x384xf32>
    %cst_10 = arith.constant 1.000000e+00 : f32
    %16 = vector.broadcast %cst_10 : f32 to vector<8x384xf32>
    %17 = arith.addf %16, %15 : vector<8x384xf32>
    %18 = arith.divf %16, %17 : vector<8x384xf32>
    %19 = vector.extract_strided_slice %12 {offsets = [0, 384], sizes = [8, 128], strides = [1, 1]} : vector<8x512xf32> to vector<8x128xf32>
    %20 = math.tanh %19 : vector<8x128xf32>
    %21 = vector.extract_strided_slice %18 {offsets = [0, 0], sizes = [8, 128], strides = [1, 1]} : vector<8x384xf32> to vector<8x128xf32>
    %22 = vector.extract_strided_slice %18 {offsets = [0, 128], sizes = [8, 128], strides = [1, 1]} : vector<8x384xf32> to vector<8x128xf32>
    %23 = vector.extract_strided_slice %18 {offsets = [0, 256], sizes = [8, 128], strides = [1, 1]} : vector<8x384xf32> to vector<8x128xf32>
    %24 = arith.mulf %22, %7 : vector<8x128xf32>
    %25 = arith.mulf %21, %20 : vector<8x128xf32>
    %26 = arith.addf %24, %25 : vector<8x128xf32>
    %27 = math.tanh %26 : vector<8x128xf32>
    %28 = arith.mulf %23, %27 : vector<8x128xf32>
    %29 = arith.truncf %28 : vector<8x128xf32> to vector<8x128xbf16>
    %c0_11 = arith.constant 0 : index
    %c0_12 = arith.constant 0 : index
    %30 = vector.load %arg3[%c0_11, %c0_12] : memref<128x512xbf16, #tpu.memory_space<vmem>>, vector<128x512xbf16>
    %cst_13 = arith.constant dense<0.000000e+00> : vector<8x512xf32>
    %31 = tpu.matmul %29, %30, %cst_13 {dimension_numbers = #tpu.dot_dimension_numbers<[1], [0], [0], [1], [0, 0, 1, 1], [], []>} : vector<8x128xbf16>, vector<128x512xbf16>, vector<8x512xf32> -> vector<8x512xf32>
    %32 = vector.extract_strided_slice %5 {offsets = [8, 0], sizes = [8, 512], strides = [1, 1]} : vector<64x512xf32> to vector<8x512xf32>
    %33 = arith.addf %32, %31 : vector<8x512xf32>
    %34 = vector.extract_strided_slice %33 {offsets = [0, 0], sizes = [8, 384], strides = [1, 1]} : vector<8x512xf32> to vector<8x384xf32>
    %35 = arith.negf %34 : vector<8x384xf32>
    %36 = math.exp %35 : vector<8x384xf32>
    %cst_14 = arith.constant 1.000000e+00 : f32
    %37 = vector.broadcast %cst_14 : f32 to vector<8x384xf32>
    %38 = arith.addf %37, %36 : vector<8x384xf32>
    %39 = arith.divf %37, %38 : vector<8x384xf32>
    %40 = vector.extract_strided_slice %33 {offsets = [0, 384], sizes = [8, 128], strides = [1, 1]} : vector<8x512xf32> to vector<8x128xf32>
    %41 = math.tanh %40 : vector<8x128xf32>
    %42 = vector.extract_strided_slice %39 {offsets = [0, 0], sizes = [8, 128], strides = [1, 1]} : vector<8x384xf32> to vector<8x128xf32>
    %43 = vector.extract_strided_slice %39 {offsets = [0, 128], sizes = [8, 128], strides = [1, 1]} : vector<8x384xf32> to vector<8x128xf32>
    %44 = vector.extract_strided_slice %39 {offsets = [0, 256], sizes = [8, 128], strides = [1, 1]} : vector<8x384xf32> to vector<8x128xf32>
    %45 = arith.mulf %43, %26 : vector<8x128xf32>
    %46 = arith.mulf %42, %41 : vector<8x128xf32>
    %47 = arith.addf %45, %46 : vector<8x128xf32>
    %48 = math.tanh %47 : vector<8x128xf32>
    %49 = arith.mulf %44, %48 : vector<8x128xf32>
    %50 = arith.truncf %49 : vector<8x128xf32> to vector<8x128xbf16>
    %c0_15 = arith.constant 0 : index
    %c0_16 = arith.constant 0 : index
    %51 = vector.load %arg3[%c0_15, %c0_16] : memref<128x512xbf16, #tpu.memory_space<vmem>>, vector<128x512xbf16>
    %cst_17 = arith.constant dense<0.000000e+00> : vector<8x512xf32>
    %52 = tpu.matmul %50, %51, %cst_17 {dimension_numbers = #tpu.dot_dimension_numbers<[1], [0], [0], [1], [0, 0, 1, 1], [], []>} : vector<8x128xbf16>, vector<128x512xbf16>, vector<8x512xf32> -> vector<8x512xf32>
    %53 = vector.extract_strided_slice %5 {offsets = [16, 0], sizes = [8, 512], strides = [1, 1]} : vector<64x512xf32> to vector<8x512xf32>
    %54 = arith.addf %53, %52 : vector<8x512xf32>
    %55 = vector.extract_strided_slice %54 {offsets = [0, 0], sizes = [8, 384], strides = [1, 1]} : vector<8x512xf32> to vector<8x384xf32>
    %56 = arith.negf %55 : vector<8x384xf32>
    %57 = math.exp %56 : vector<8x384xf32>
    %cst_18 = arith.constant 1.000000e+00 : f32
    %58 = vector.broadcast %cst_18 : f32 to vector<8x384xf32>
    %59 = arith.addf %58, %57 : vector<8x384xf32>
    %60 = arith.divf %58, %59 : vector<8x384xf32>
    %61 = vector.extract_strided_slice %54 {offsets = [0, 384], sizes = [8, 128], strides = [1, 1]} : vector<8x512xf32> to vector<8x128xf32>
    %62 = math.tanh %61 : vector<8x128xf32>
    %63 = vector.extract_strided_slice %60 {offsets = [0, 0], sizes = [8, 128], strides = [1, 1]} : vector<8x384xf32> to vector<8x128xf32>
    %64 = vector.extract_strided_slice %60 {offsets = [0, 128], sizes = [8, 128], strides = [1, 1]} : vector<8x384xf32> to vector<8x128xf32>
    %65 = vector.extract_strided_slice %60 {offsets = [0, 256], sizes = [8, 128], strides = [1, 1]} : vector<8x384xf32> to vector<8x128xf32>
    %66 = arith.mulf %64, %47 : vector<8x128xf32>
    %67 = arith.mulf %63, %62 : vector<8x128xf32>
    %68 = arith.addf %66, %67 : vector<8x128xf32>
    %69 = math.tanh %68 : vector<8x128xf32>
    %70 = arith.mulf %65, %69 : vector<8x128xf32>
    %71 = arith.truncf %70 : vector<8x128xf32> to vector<8x128xbf16>
    %c0_19 = arith.constant 0 : index
    %c0_20 = arith.constant 0 : index
    %72 = vector.load %arg3[%c0_19, %c0_20] : memref<128x512xbf16, #tpu.memory_space<vmem>>, vector<128x512xbf16>
    %cst_21 = arith.constant dense<0.000000e+00> : vector<8x512xf32>
    %73 = tpu.matmul %71, %72, %cst_21 {dimension_numbers = #tpu.dot_dimension_numbers<[1], [0], [0], [1], [0, 0, 1, 1], [], []>} : vector<8x128xbf16>, vector<128x512xbf16>, vector<8x512xf32> -> vector<8x512xf32>
    %74 = vector.extract_strided_slice %5 {offsets = [24, 0], sizes = [8, 512], strides = [1, 1]} : vector<64x512xf32> to vector<8x512xf32>
    %75 = arith.addf %74, %73 : vector<8x512xf32>
    %76 = vector.extract_strided_slice %75 {offsets = [0, 0], sizes = [8, 384], strides = [1, 1]} : vector<8x512xf32> to vector<8x384xf32>
    %77 = arith.negf %76 : vector<8x384xf32>
    %78 = math.exp %77 : vector<8x384xf32>
    %cst_22 = arith.constant 1.000000e+00 : f32
    %79 = vector.broadcast %cst_22 : f32 to vector<8x384xf32>
    %80 = arith.addf %79, %78 : vector<8x384xf32>
    %81 = arith.divf %79, %80 : vector<8x384xf32>
    %82 = vector.extract_strided_slice %75 {offsets = [0, 384], sizes = [8, 128], strides = [1, 1]} : vector<8x512xf32> to vector<8x128xf32>
    %83 = math.tanh %82 : vector<8x128xf32>
    %84 = vector.extract_strided_slice %81 {offsets = [0, 0], sizes = [8, 128], strides = [1, 1]} : vector<8x384xf32> to vector<8x128xf32>
    %85 = vector.extract_strided_slice %81 {offsets = [0, 128], sizes = [8, 128], strides = [1, 1]} : vector<8x384xf32> to vector<8x128xf32>
    %86 = vector.extract_strided_slice %81 {offsets = [0, 256], sizes = [8, 128], strides = [1, 1]} : vector<8x384xf32> to vector<8x128xf32>
    %87 = arith.mulf %85, %68 : vector<8x128xf32>
    %88 = arith.mulf %84, %83 : vector<8x128xf32>
    %89 = arith.addf %87, %88 : vector<8x128xf32>
    %90 = math.tanh %89 : vector<8x128xf32>
    %91 = arith.mulf %86, %90 : vector<8x128xf32>
    %92 = arith.truncf %91 : vector<8x128xf32> to vector<8x128xbf16>
    %c0_23 = arith.constant 0 : index
    %c0_24 = arith.constant 0 : index
    %93 = vector.load %arg3[%c0_23, %c0_24] : memref<128x512xbf16, #tpu.memory_space<vmem>>, vector<128x512xbf16>
    %cst_25 = arith.constant dense<0.000000e+00> : vector<8x512xf32>
    %94 = tpu.matmul %92, %93, %cst_25 {dimension_numbers = #tpu.dot_dimension_numbers<[1], [0], [0], [1], [0, 0, 1, 1], [], []>} : vector<8x128xbf16>, vector<128x512xbf16>, vector<8x512xf32> -> vector<8x512xf32>
    %95 = vector.extract_strided_slice %5 {offsets = [32, 0], sizes = [8, 512], strides = [1, 1]} : vector<64x512xf32> to vector<8x512xf32>
    %96 = arith.addf %95, %94 : vector<8x512xf32>
    %97 = vector.extract_strided_slice %96 {offsets = [0, 0], sizes = [8, 384], strides = [1, 1]} : vector<8x512xf32> to vector<8x384xf32>
    %98 = arith.negf %97 : vector<8x384xf32>
    %99 = math.exp %98 : vector<8x384xf32>
    %cst_26 = arith.constant 1.000000e+00 : f32
    %100 = vector.broadcast %cst_26 : f32 to vector<8x384xf32>
    %101 = arith.addf %100, %99 : vector<8x384xf32>
    %102 = arith.divf %100, %101 : vector<8x384xf32>
    %103 = vector.extract_strided_slice %96 {offsets = [0, 384], sizes = [8, 128], strides = [1, 1]} : vector<8x512xf32> to vector<8x128xf32>
    %104 = math.tanh %103 : vector<8x128xf32>
    %105 = vector.extract_strided_slice %102 {offsets = [0, 0], sizes = [8, 128], strides = [1, 1]} : vector<8x384xf32> to vector<8x128xf32>
    %106 = vector.extract_strided_slice %102 {offsets = [0, 128], sizes = [8, 128], strides = [1, 1]} : vector<8x384xf32> to vector<8x128xf32>
    %107 = vector.extract_strided_slice %102 {offsets = [0, 256], sizes = [8, 128], strides = [1, 1]} : vector<8x384xf32> to vector<8x128xf32>
    %108 = arith.mulf %106, %89 : vector<8x128xf32>
    %109 = arith.mulf %105, %104 : vector<8x128xf32>
    %110 = arith.addf %108, %109 : vector<8x128xf32>
    %111 = math.tanh %110 : vector<8x128xf32>
    %112 = arith.mulf %107, %111 : vector<8x128xf32>
    %113 = arith.truncf %112 : vector<8x128xf32> to vector<8x128xbf16>
    %c0_27 = arith.constant 0 : index
    %c0_28 = arith.constant 0 : index
    %114 = vector.load %arg3[%c0_27, %c0_28] : memref<128x512xbf16, #tpu.memory_space<vmem>>, vector<128x512xbf16>
    %cst_29 = arith.constant dense<0.000000e+00> : vector<8x512xf32>
    %115 = tpu.matmul %113, %114, %cst_29 {dimension_numbers = #tpu.dot_dimension_numbers<[1], [0], [0], [1], [0, 0, 1, 1], [], []>} : vector<8x128xbf16>, vector<128x512xbf16>, vector<8x512xf32> -> vector<8x512xf32>
    %116 = vector.extract_strided_slice %5 {offsets = [40, 0], sizes = [8, 512], strides = [1, 1]} : vector<64x512xf32> to vector<8x512xf32>
    %117 = arith.addf %116, %115 : vector<8x512xf32>
    %118 = vector.extract_strided_slice %117 {offsets = [0, 0], sizes = [8, 384], strides = [1, 1]} : vector<8x512xf32> to vector<8x384xf32>
    %119 = arith.negf %118 : vector<8x384xf32>
    %120 = math.exp %119 : vector<8x384xf32>
    %cst_30 = arith.constant 1.000000e+00 : f32
    %121 = vector.broadcast %cst_30 : f32 to vector<8x384xf32>
    %122 = arith.addf %121, %120 : vector<8x384xf32>
    %123 = arith.divf %121, %122 : vector<8x384xf32>
    %124 = vector.extract_strided_slice %117 {offsets = [0, 384], sizes = [8, 128], strides = [1, 1]} : vector<8x512xf32> to vector<8x128xf32>
    %125 = math.tanh %124 : vector<8x128xf32>
    %126 = vector.extract_strided_slice %123 {offsets = [0, 0], sizes = [8, 128], strides = [1, 1]} : vector<8x384xf32> to vector<8x128xf32>
    %127 = vector.extract_strided_slice %123 {offsets = [0, 128], sizes = [8, 128], strides = [1, 1]} : vector<8x384xf32> to vector<8x128xf32>
    %128 = vector.extract_strided_slice %123 {offsets = [0, 256], sizes = [8, 128], strides = [1, 1]} : vector<8x384xf32> to vector<8x128xf32>
    %129 = arith.mulf %127, %110 : vector<8x128xf32>
    %130 = arith.mulf %126, %125 : vector<8x128xf32>
    %131 = arith.addf %129, %130 : vector<8x128xf32>
    %132 = math.tanh %131 : vector<8x128xf32>
    %133 = arith.mulf %128, %132 : vector<8x128xf32>
    %134 = arith.truncf %133 : vector<8x128xf32> to vector<8x128xbf16>
    %c0_31 = arith.constant 0 : index
    %c0_32 = arith.constant 0 : index
    %135 = vector.load %arg3[%c0_31, %c0_32] : memref<128x512xbf16, #tpu.memory_space<vmem>>, vector<128x512xbf16>
    %cst_33 = arith.constant dense<0.000000e+00> : vector<8x512xf32>
    %136 = tpu.matmul %134, %135, %cst_33 {dimension_numbers = #tpu.dot_dimension_numbers<[1], [0], [0], [1], [0, 0, 1, 1], [], []>} : vector<8x128xbf16>, vector<128x512xbf16>, vector<8x512xf32> -> vector<8x512xf32>
    %137 = vector.extract_strided_slice %5 {offsets = [48, 0], sizes = [8, 512], strides = [1, 1]} : vector<64x512xf32> to vector<8x512xf32>
    %138 = arith.addf %137, %136 : vector<8x512xf32>
    %139 = vector.extract_strided_slice %138 {offsets = [0, 0], sizes = [8, 384], strides = [1, 1]} : vector<8x512xf32> to vector<8x384xf32>
    %140 = arith.negf %139 : vector<8x384xf32>
    %141 = math.exp %140 : vector<8x384xf32>
    %cst_34 = arith.constant 1.000000e+00 : f32
    %142 = vector.broadcast %cst_34 : f32 to vector<8x384xf32>
    %143 = arith.addf %142, %141 : vector<8x384xf32>
    %144 = arith.divf %142, %143 : vector<8x384xf32>
    %145 = vector.extract_strided_slice %138 {offsets = [0, 384], sizes = [8, 128], strides = [1, 1]} : vector<8x512xf32> to vector<8x128xf32>
    %146 = math.tanh %145 : vector<8x128xf32>
    %147 = vector.extract_strided_slice %144 {offsets = [0, 0], sizes = [8, 128], strides = [1, 1]} : vector<8x384xf32> to vector<8x128xf32>
    %148 = vector.extract_strided_slice %144 {offsets = [0, 128], sizes = [8, 128], strides = [1, 1]} : vector<8x384xf32> to vector<8x128xf32>
    %149 = vector.extract_strided_slice %144 {offsets = [0, 256], sizes = [8, 128], strides = [1, 1]} : vector<8x384xf32> to vector<8x128xf32>
    %150 = arith.mulf %148, %131 : vector<8x128xf32>
    %151 = arith.mulf %147, %146 : vector<8x128xf32>
    %152 = arith.addf %150, %151 : vector<8x128xf32>
    %153 = math.tanh %152 : vector<8x128xf32>
    %154 = arith.mulf %149, %153 : vector<8x128xf32>
    %155 = arith.truncf %154 : vector<8x128xf32> to vector<8x128xbf16>
    %c0_35 = arith.constant 0 : index
    %c0_36 = arith.constant 0 : index
    %156 = vector.load %arg3[%c0_35, %c0_36] : memref<128x512xbf16, #tpu.memory_space<vmem>>, vector<128x512xbf16>
    %cst_37 = arith.constant dense<0.000000e+00> : vector<8x512xf32>
    %157 = tpu.matmul %155, %156, %cst_37 {dimension_numbers = #tpu.dot_dimension_numbers<[1], [0], [0], [1], [0, 0, 1, 1], [], []>} : vector<8x128xbf16>, vector<128x512xbf16>, vector<8x512xf32> -> vector<8x512xf32>
    %158 = vector.extract_strided_slice %5 {offsets = [56, 0], sizes = [8, 512], strides = [1, 1]} : vector<64x512xf32> to vector<8x512xf32>
    %159 = arith.addf %158, %157 : vector<8x512xf32>
    %160 = vector.extract_strided_slice %159 {offsets = [0, 0], sizes = [8, 384], strides = [1, 1]} : vector<8x512xf32> to vector<8x384xf32>
    %161 = arith.negf %160 : vector<8x384xf32>
    %162 = math.exp %161 : vector<8x384xf32>
    %cst_38 = arith.constant 1.000000e+00 : f32
    %163 = vector.broadcast %cst_38 : f32 to vector<8x384xf32>
    %164 = arith.addf %163, %162 : vector<8x384xf32>
    %165 = arith.divf %163, %164 : vector<8x384xf32>
    %166 = vector.extract_strided_slice %159 {offsets = [0, 384], sizes = [8, 128], strides = [1, 1]} : vector<8x512xf32> to vector<8x128xf32>
    %167 = math.tanh %166 : vector<8x128xf32>
    %168 = vector.extract_strided_slice %165 {offsets = [0, 0], sizes = [8, 128], strides = [1, 1]} : vector<8x384xf32> to vector<8x128xf32>
    %169 = vector.extract_strided_slice %165 {offsets = [0, 128], sizes = [8, 128], strides = [1, 1]} : vector<8x384xf32> to vector<8x128xf32>
    %170 = vector.extract_strided_slice %165 {offsets = [0, 256], sizes = [8, 128], strides = [1, 1]} : vector<8x384xf32> to vector<8x128xf32>
    %171 = arith.mulf %169, %152 : vector<8x128xf32>
    %172 = arith.mulf %168, %167 : vector<8x128xf32>
    %173 = arith.addf %171, %172 : vector<8x128xf32>
    %174 = math.tanh %173 : vector<8x128xf32>
    %175 = arith.mulf %170, %174 : vector<8x128xf32>
    %c0_39 = arith.constant 0 : index
    %c0_40 = arith.constant 0 : index
    %176 = vector.load %arg4[%c0_39, %c0_40] : memref<128x4xf32, #tpu.memory_space<vmem>>, vector<128x4xf32>
    %cst_41 = arith.constant dense<0.000000e+00> : vector<8x4xf32>
    %177 = tpu.matmul %175, %176, %cst_41 {dimension_numbers = #tpu.dot_dimension_numbers<[1], [0], [0], [1], [0, 0, 1, 1], [], []>} : vector<8x128xf32>, vector<128x4xf32>, vector<8x4xf32> -> vector<8x4xf32>
    %c0_42 = arith.constant 0 : index
    %c0_43 = arith.constant 0 : index
    %178 = vector.load %arg5[%c0_42, %c0_43] : memref<1x4xf32, #tpu.memory_space<vmem>>, vector<1x4xf32>
    %179 = vector.broadcast %178 : vector<1x4xf32> to vector<8x4xf32>
    %180 = arith.addf %177, %179 : vector<8x4xf32>
    %181 = arith.negf %180 : vector<8x4xf32>
    %182 = math.exp %181 : vector<8x4xf32>
    %cst_44 = arith.constant 1.000000e+00 : f32
    %183 = vector.broadcast %cst_44 : f32 to vector<8x4xf32>
    %184 = arith.addf %183, %182 : vector<8x4xf32>
    %185 = arith.divf %183, %184 : vector<8x4xf32>
    %c0_45 = arith.constant 0 : index
    %c0_46 = arith.constant 0 : index
    %186 = vector.load %arg6[%c0_45, %c0_46] : memref<8x4xf32, #tpu.memory_space<vmem>>, vector<8x4xf32>
    tpu.vector_store %arg6[%c0_45, %c0_46], %185 {strides = array<i32>} : memref<8x4xf32, #tpu.memory_space<vmem>>, vector<8x4xf32>,
    return
  }
}

</mosaic_0001>

<llo_original>
// kernel: tpu_custom_call.1
$region0: #{tpu_custom_call.1}
  #allocation0 [shape = 'u32[]', space=smem, size = 0x4, offset = 0x4, fixed_abs, tag = 'smem constant byte address 0x4 - core index']
  #allocation1 [shape = 'u32[72,128]{1,0:T(1,128)}', space=vmem, size = 0x9000, scoped, tag = 'internal scratch']
  %s0 = inlined_call_operand.vmem [shape: f32[64,8], index: 0, kind: input, shape index: {}]
  %s1 = inlined_call_operand.vmem [shape: f32[8,512], index: 1, kind: input, shape index: {}]
  %s2 = inlined_call_operand.vmem [shape: f32[1,512], index: 2, kind: input, shape index: {}]
  %s3 = inlined_call_operand.hbm [shape: bf16[128,512], index: 3, kind: input, shape index: {}]
  %s4 = inlined_call_operand.vmem [shape: f32[128,4], index: 4, kind: input, shape index: {}]
  %s5 = inlined_call_operand.vmem [shape: f32[1,4], index: 5, kind: input, shape index: {}]
  %s6 = inlined_call_operand.vmem [shape: f32[8,4], index: 6, kind: output, shape index: {}]
  %s7 = sld [smem:[#allocation0]]
  $region38: #{tpu_custom_call.1} parent=0
    _
  %s9 = ssub.s32 1, %s7
  %s10 = scalar_select 0, %s9, %s7
  $region1: #{tpu_custom_call.1} parent=0
    #allocation2 [shape = 'u8[131072]{0}', space=vmem, size = 0x20000, scoped, tag = 'input window, operand 3, single buffered']
    #allocation3 [shape = 's32[1]{0}', space=sflag, size = 0x4, scoped, tag = 'scoped memory for tpu_custom_call.1']
    %11 = vsyncpa [#allocation3], 0
    // Predicated region
    $region2: #{tpu_custom_call.1} parent=1 // pred_check
      _
    $region3: #{tpu_custom_call.1} parent=1 // pred_check_branch
      %13 = sbr.rel (0) target = $region5
    $region4: #{tpu_custom_call.1} parent=1 // pred_region
      _
    $region5: #{tpu_custom_call.1} parent=1 // pred_fallthru
      _
    // Predicated region
    $region6: #{tpu_custom_call.1} parent=1 // pred_check
      _
    $region7: #{tpu_custom_call.1} parent=1 // pred_check_branch
      %15 = sbr.rel (0) target = $region9
    $region8: #{tpu_custom_call.1} parent=1 // pred_region
      _
    $region9: #{tpu_custom_call.1} parent=1 // pred_fallthru
      _
    // Predicated region
    $region10: #{tpu_custom_call.1} parent=1 // pred_check
      _
    $region11: #{tpu_custom_call.1} parent=1 // pred_check_branch
      %17 = sbr.rel (0) target = $region13
    $region12: #{tpu_custom_call.1} parent=1 // pred_region
      _
    $region13: #{tpu_custom_call.1} parent=1 // pred_fallthru
      _
    // Predicated region
    $region14: #{tpu_custom_call.1} parent=1 // pred_check
      _
    $region15: #{tpu_custom_call.1} parent=1 // pred_check_branch
      %19 = sbr.rel (0) target = $region17
    $region16: #{tpu_custom_call.1} parent=1 // pred_region
      %21 = vsyncadd [#allocation3], 0
      %s22 = sshll.u32 %s3, 4
      %s23 = int_to_ptr.hbm [resolvable:$true] %s22
      %s24 = sshll.u32 [#allocation2], 4
      %s25 = int_to_ptr.vmem [resolvable:$true] %s24
      %30 = dma.hbm_to_vmem [thread:$0]  %s23, 4096, %s25, [#allocation3], 256, 256, 16
    $region17: #{tpu_custom_call.1} parent=1 // pred_fallthru
      _
    // Predicated region
    $region18: #{tpu_custom_call.1} parent=1 // pred_check
      _
    $region19: #{tpu_custom_call.1} parent=1 // pred_check_branch
      %32 = sbr.rel (0) target = $region21
    $region20: #{tpu_custom_call.1} parent=1 // pred_region
      _
    $region21: #{tpu_custom_call.1} parent=1 // pred_fallthru
      _
    // Predicated region
    $region22: #{tpu_custom_call.1} parent=1 // pred_check
      _
    $region23: #{tpu_custom_call.1} parent=1 // pred_check_branch
      %34 = sbr.rel (0) target = $region25
    $region24: #{tpu_custom_call.1} parent=1 // pred_region
      _
    $region25: #{tpu_custom_call.1} parent=1 // pred_fallthru
      _
    // Predicated region
    $region26: #{tpu_custom_call.1} parent=1 // pred_check
      _
    $region27: #{tpu_custom_call.1} parent=1 // pred_check_branch
      %36 = sbr.rel (0) target = $region29
    $region28: #{tpu_custom_call.1} parent=1 // pred_region
      %38 = dma.done [#allocation3], 4096
    $region29: #{tpu_custom_call.1} parent=1 // pred_fallthru
      _
    %v40 = vld [vmem:[%s0] sm:$0xff]
    %v41 = vld [vmem:[%s0 + $0x8] sm:$0xff]
    %v42 = vld [vmem:[%s0 + $0x10] sm:$0xff]
    %v43 = vld [vmem:[%s0 + $0x18] sm:$0xff]
    %v44 = vld [vmem:[%s0 + $0x20] sm:$0xff]
    %v45 = vld [vmem:[%s0 + $0x28] sm:$0xff]
    %v46 = vld [vmem:[%s0 + $0x30] sm:$0xff]
    %v47 = vld [vmem:[%s0 + $0x38] sm:$0xff]
    %v48 = vld [vmem:[%s1] sm:$0xff]
    %v49 = vld [vmem:[%s1 + $0x8] sm:$0xff]
    %v50 = vld [vmem:[%s1 + $0x10] sm:$0xff]
    %v51 = vld [vmem:[%s1 + $0x18] sm:$0xff]
    %v52 = vld [vmem:[%s2] sm:$0xf]
    %v54 = vperm.slane %v52, 0
    %v55 = vperm.slane %v52, 1
    %v56 = vperm.slane %v52, 2
    %v57 = vperm.slane %v52, 3
    %vm62 = vcmask 64512
    %v64 = vsel %vm62, %v40, 0
    %v67 = vsel %vm62, %v41, 0
    %v70 = vsel %vm62, %v42, 0
    %v73 = vsel %vm62, %v43, 0
    %v76 = vsel %vm62, %v44, 0
    %v79 = vsel %vm62, %v45, 0
    %v82 = vsel %vm62, %v46, 0
    %v85 = vsel %vm62, %v47, 0
    %87 = vmatpush.msra.mxu0 0.0
    %88 = vmatpush.msra.mxu0 0.0
    %89 = vmatpush.msra.mxu0 0.0
    %90 = vmatpush.msra.mxu0 0.0
    %91 = vmatpush.msra.mxu0 0.0
    %92 = vmatpush.msra.mxu0 0.0
    %93 = vmatpush.msra.mxu0 0.0
    %94 = vmatpush.msra.mxu0 0.0
    %95 = vmatpush.msra.mxu0 0.0
    %96 = vmatpush.msra.mxu0 0.0
    %97 = vmatpush.msra.mxu0 0.0
    %98 = vmatpush.msra.mxu0 0.0
    %99 = vmatpush.msra.mxu0 0.0
    %100 = vmatpush.msra.mxu0 0.0
    %101 = vmatpush.msra.mxu0 0.0
    %102 = vmatpush.msra.mxu0 %v48
    %103 = vmatmul.f32.gmra.mxu0 %v64
    %v104 = vpop.f32.mrf.mxu0
    %v105 = vadd.f32 %v54, %v104
    %106 = vmatmul.f32.gmra.mxu0 %v67
    %v107 = vpop.f32.mrf.mxu0
    %v108 = vadd.f32 %v54, %v107
    %109 = vmatmul.f32.gmra.mxu0 %v70
    %v110 = vpop.f32.mrf.mxu0
    %v111 = vadd.f32 %v54, %v110
    %112 = vmatmul.f32.gmra.mxu0 %v73
    %v113 = vpop.f32.mrf.mxu0
    %v114 = vadd.f32 %v54, %v113
    %115 = vmatmul.f32.gmra.mxu0 %v76
    %v116 = vpop.f32.mrf.mxu0
    %v117 = vadd.f32 %v54, %v116
    %118 = vmatmul.f32.gmra.mxu0 %v79
    %v119 = vpop.f32.mrf.mxu0
    %v120 = vadd.f32 %v54, %v119
    %121 = vmatmul.f32.gmra.mxu0 %v82
    %v122 = vpop.f32.mrf.mxu0
    %v123 = vadd.f32 %v54, %v122
    %124 = vmatmul.f32.gmra.mxu0 %v85
    %v125 = vpop.f32.mrf.mxu0
    %v126 = vadd.f32 %v54, %v125
    %127 = vdwg.mxu0
    %128 = vmatpush.msra.mxu0 0.0
    %129 = vmatpush.msra.mxu0 0.0
    %130 = vmatpush.msra.mxu0 0.0
    %131 = vmatpush.msra.mxu0 0.0
    %132 = vmatpush.msra.mxu0 0.0
    %133 = vmatpush.msra.mxu0 0.0
    %134 = vmatpush.msra.mxu0 0.0
    %135 = vmatpush.msra.mxu0 0.0
    %136 = vmatpush.msra.mxu0 0.0
    %137 = vmatpush.msra.mxu0 0.0
    %138 = vmatpush.msra.mxu0 0.0
    %139 = vmatpush.msra.mxu0 0.0
    %140 = vmatpush.msra.mxu0 0.0
    %141 = vmatpush.msra.mxu0 0.0
    %142 = vmatpush.msra.mxu0 0.0
    %143 = vmatpush.msra.mxu0 %v49
    %144 = vmatmul.f32.gmra.mxu0 %v64
    %v145 = vpop.f32.mrf.mxu0
    %v146 = vadd.f32 %v55, %v145
    %147 = vmatmul.f32.gmra.mxu0 %v67
    %v148 = vpop.f32.mrf.mxu0
    %v149 = vadd.f32 %v55, %v148
    %150 = vmatmul.f32.gmra.mxu0 %v70
    %v151 = vpop.f32.mrf.mxu0
    %v152 = vadd.f32 %v55, %v151
    %153 = vmatmul.f32.gmra.mxu0 %v73
    %v154 = vpop.f32.mrf.mxu0
    %v155 = vadd.f32 %v55, %v154
    %156 = vmatmul.f32.gmra.mxu0 %v76
    %v157 = vpop.f32.mrf.mxu0
    %v158 = vadd.f32 %v55, %v157
    %159 = vmatmul.f32.gmra.mxu0 %v79
    %v160 = vpop.f32.mrf.mxu0
    %v161 = vadd.f32 %v55, %v160
    %162 = vmatmul.f32.gmra.mxu0 %v82
    %v163 = vpop.f32.mrf.mxu0
    %v164 = vadd.f32 %v55, %v163
    %165 = vmatmul.f32.gmra.mxu0 %v85
    %v166 = vpop.f32.mrf.mxu0
    %v167 = vadd.f32 %v55, %v166
    %168 = vdwg.mxu0
    %169 = vmatpush.msra.mxu0 0.0
    %170 = vmatpush.msra.mxu0 0.0
    %171 = vmatpush.msra.mxu0 0.0
    %172 = vmatpush.msra.mxu0 0.0
    %173 = vmatpush.msra.mxu0 0.0
    %174 = vmatpush.msra.mxu0 0.0
    %175 = vmatpush.msra.mxu0 0.0
    %176 = vmatpush.msra.mxu0 0.0
    %177 = vmatpush.msra.mxu0 0.0
    %178 = vmatpush.msra.mxu0 0.0
    %179 = vmatpush.msra.mxu0 0.0
    %180 = vmatpush.msra.mxu0 0.0
    %181 = vmatpush.msra.mxu0 0.0
    %182 = vmatpush.msra.mxu0 0.0
    %183 = vmatpush.msra.mxu0 0.0
    %184 = vmatpush.msra.mxu0 %v50
    %185 = vmatmul.f32.gmra.mxu0 %v64
    %v186 = vpop.f32.mrf.mxu0
    %v187 = vadd.f32 %v56, %v186
    %188 = vmatmul.f32.gmra.mxu0 %v67
    %v189 = vpop.f32.mrf.mxu0
    %v190 = vadd.f32 %v56, %v189
    %191 = vmatmul.f32.gmra.mxu0 %v70
    %v192 = vpop.f32.mrf.mxu0
    %v193 = vadd.f32 %v56, %v192
    %194 = vmatmul.f32.gmra.mxu0 %v73
    %v195 = vpop.f32.mrf.mxu0
    %v196 = vadd.f32 %v56, %v195
    %197 = vmatmul.f32.gmra.mxu0 %v76
    %v198 = vpop.f32.mrf.mxu0
    %v199 = vadd.f32 %v56, %v198
    %200 = vmatmul.f32.gmra.mxu0 %v79
    %v201 = vpop.f32.mrf.mxu0
    %v202 = vadd.f32 %v56, %v201
    %203 = vmatmul.f32.gmra.mxu0 %v82
    %v204 = vpop.f32.mrf.mxu0
    %v205 = vadd.f32 %v56, %v204
    %206 = vmatmul.f32.gmra.mxu0 %v85
    %v207 = vpop.f32.mrf.mxu0
    %v208 = vadd.f32 %v56, %v207
    %209 = vdwg.mxu0
    %210 = vmatpush.msra.mxu0 0.0
    %211 = vmatpush.msra.mxu0 0.0
    %212 = vmatpush.msra.mxu0 0.0
    %213 = vmatpush.msra.mxu0 0.0
    %214 = vmatpush.msra.mxu0 0.0
    %215 = vmatpush.msra.mxu0 0.0
    %216 = vmatpush.msra.mxu0 0.0
    %217 = vmatpush.msra.mxu0 0.0
    %218 = vmatpush.msra.mxu0 0.0
    %219 = vmatpush.msra.mxu0 0.0
    %220 = vmatpush.msra.mxu0 0.0
    %221 = vmatpush.msra.mxu0 0.0
    %222 = vmatpush.msra.mxu0 0.0
    %223 = vmatpush.msra.mxu0 0.0
    %224 = vmatpush.msra.mxu0 0.0
    %225 = vmatpush.msra.mxu0 %v51
    %226 = vmatmul.f32.gmra.mxu0 %v64
    %v227 = vpop.f32.mrf.mxu0
    %v228 = vadd.f32 %v57, %v227
    %229 = vmatmul.f32.gmra.mxu0 %v67
    %v230 = vpop.f32.mrf.mxu0
    %v231 = vadd.f32 %v57, %v230
    %232 = vmatmul.f32.gmra.mxu0 %v70
    %v233 = vpop.f32.mrf.mxu0
    %v234 = vadd.f32 %v57, %v233
    %235 = vmatmul.f32.gmra.mxu0 %v73
    %v236 = vpop.f32.mrf.mxu0
    %v237 = vadd.f32 %v57, %v236
    %238 = vmatmul.f32.gmra.mxu0 %v76
    %v239 = vpop.f32.mrf.mxu0
    %v240 = vadd.f32 %v57, %v239
    %241 = vmatmul.f32.gmra.mxu0 %v79
    %v242 = vpop.f32.mrf.mxu0
    %v243 = vadd.f32 %v57, %v242
    %244 = vmatmul.f32.gmra.mxu0 %v82
    %v245 = vpop.f32.mrf.mxu0
    %v246 = vadd.f32 %v57, %v245
    %247 = vmatmul.f32.gmra.mxu0 %v85
    %v248 = vpop.f32.mrf.mxu0
    %v249 = vadd.f32 %v57, %v248
    %250 = vdwg.mxu0
    %v251 = vld [vmem:[#allocation2] sm:$0xff]
    %v252 = vld [vmem:[#allocation2 + $0x8] sm:$0xff]
    %v253 = vld [vmem:[#allocation2 + $0x10] sm:$0xff]
    %v254 = vld [vmem:[#allocation2 + $0x18] sm:$0xff]
    %v255 = vld [vmem:[#allocation2 + $0x20] sm:$0xff]
    %v256 = vld [vmem:[#allocation2 + $0x28] sm:$0xff]
    %v257 = vld [vmem:[#allocation2 + $0x30] sm:$0xff]
    %v258 = vld [vmem:[#allocation2 + $0x38] sm:$0xff]
    %v259 = vld [vmem:[#allocation2 + $0x40] sm:$0xff]
    %v260 = vld [vmem:[#allocation2 + $0x48] sm:$0xff]
    %v261 = vld [vmem:[#allocation2 + $0x50] sm:$0xff]
    %v262 = vld [vmem:[#allocation2 + $0x58] sm:$0xff]
    %v263 = vld [vmem:[#allocation2 + $0x60] sm:$0xff]
    %v264 = vld [vmem:[#allocation2 + $0x68] sm:$0xff]
    %v265 = vld [vmem:[#allocation2 + $0x70] sm:$0xff]
    %v266 = vld [vmem:[#allocation2 + $0x78] sm:$0xff]
    %v267 = vld [vmem:[#allocation2 + $0x80] sm:$0xff]
    %v268 = vld [vmem:[#allocation2 + $0x88] sm:$0xff]
    %v269 = vld [vmem:[#allocation2 + $0x90] sm:$0xff]
    %v270 = vld [vmem:[#allocation2 + $0x98] sm:$0xff]
    %v271 = vld [vmem:[#allocation2 + $0xa0] sm:$0xff]
    %v272 = vld [vmem:[#allocation2 + $0xa8] sm:$0xff]
    %v273 = vld [vmem:[#allocation2 + $0xb0] sm:$0xff]
    %v274 = vld [vmem:[#allocation2 + $0xb8] sm:$0xff]
    %v275 = vld [vmem:[#allocation2 + $0xc0] sm:$0xff]
    %v276 = vld [vmem:[#allocation2 + $0xc8] sm:$0xff]
    %v277 = vld [vmem:[#allocation2 + $0xd0] sm:$0xff]
    %v278 = vld [vmem:[#allocation2 + $0xd8] sm:$0xff]
    %v279 = vld [vmem:[#allocation2 + $0xe0] sm:$0xff]
    %v280 = vld [vmem:[#allocation2 + $0xe8] sm:$0xff]
    %v281 = vld [vmem:[#allocation2 + $0xf0] sm:$0xff]
    %v282 = vld [vmem:[#allocation2 + $0xf8] sm:$0xff]
    %v315 = vunpack.c.l.b16 %v251
    %v316 = vunpack.c.h.b16 %v251
    %v317 = vunpack.c.l.b16 %v252
    %v318 = vunpack.c.h.b16 %v252
    %v319 = vunpack.c.l.b16 %v253
    %v320 = vunpack.c.h.b16 %v253
    %v321 = vunpack.c.l.b16 %v254
    %v322 = vunpack.c.h.b16 %v254
    %v323 = vunpack.c.l.b16 %v255
    %v324 = vunpack.c.h.b16 %v255
    %v325 = vunpack.c.l.b16 %v256
    %v326 = vunpack.c.h.b16 %v256
    %v327 = vunpack.c.l.b16 %v257
    %v328 = vunpack.c.h.b16 %v257
    %v329 = vunpack.c.l.b16 %v258
    %v330 = vunpack.c.h.b16 %v258
    %v331 = vunpack.c.l.b16 %v259
    %v332 = vunpack.c.h.b16 %v259
    %v333 = vunpack.c.l.b16 %v260
    %v334 = vunpack.c.h.b16 %v260
    %v335 = vunpack.c.l.b16 %v261
    %v336 = vunpack.c.h.b16 %v261
    %v337 = vunpack.c.l.b16 %v262
    %v338 = vunpack.c.h.b16 %v262
    %v339 = vunpack.c.l.b16 %v263
    %v340 = vunpack.c.h.b16 %v263
    %v341 = vunpack.c.l.b16 %v264
    %v342 = vunpack.c.h.b16 %v264
    %v343 = vunpack.c.l.b16 %v265
    %v344 = vunpack.c.h.b16 %v265
    %v345 = vunpack.c.l.b16 %v266
    %v346 = vunpack.c.h.b16 %v266
    %v347 = vunpack.c.l.b16 %v267
    %v348 = vunpack.c.h.b16 %v267
    %v349 = vunpack.c.l.b16 %v268
    %v350 = vunpack.c.h.b16 %v268
    %v351 = vunpack.c.l.b16 %v269
    %v352 = vunpack.c.h.b16 %v269
    %v353 = vunpack.c.l.b16 %v270
    %v354 = vunpack.c.h.b16 %v270
    %v355 = vunpack.c.l.b16 %v271
    %v356 = vunpack.c.h.b16 %v271
    %v357 = vunpack.c.l.b16 %v272
    %v358 = vunpack.c.h.b16 %v272
    %v359 = vunpack.c.l.b16 %v273
    %v360 = vunpack.c.h.b16 %v273
    %v361 = vunpack.c.l.b16 %v274
    %v362 = vunpack.c.h.b16 %v274
    %v363 = vunpack.c.l.b16 %v275
    %v364 = vunpack.c.h.b16 %v275
    %v365 = vunpack.c.l.b16 %v276
    %v366 = vunpack.c.h.b16 %v276
    %v367 = vunpack.c.l.b16 %v277
    %v368 = vunpack.c.h.b16 %v277
    %v369 = vunpack.c.l.b16 %v278
    %v370 = vunpack.c.h.b16 %v278
    %v371 = vunpack.c.l.b16 %v279
    %v372 = vunpack.c.h.b16 %v279
    %v373 = vunpack.c.l.b16 %v280
    %v374 = vunpack.c.h.b16 %v280
    %v375 = vunpack.c.l.b16 %v281
    %v376 = vunpack.c.h.b16 %v281
    %v377 = vunpack.c.l.b16 %v282
    %v378 = vunpack.c.h.b16 %v282
    %v379 = vpack.c.b16 %v319, %v315
    %v380 = vpack.c.b16 %v320, %v316
    %v381 = vpack.c.b16 %v321, %v317
    %v382 = vpack.c.b16 %v322, %v318
    %v383 = vpack.c.b16 %v327, %v323
    %v384 = vpack.c.b16 %v328, %v324
    %v385 = vpack.c.b16 %v329, %v325
    %v386 = vpack.c.b16 %v330, %v326
    %v387 = vpack.c.b16 %v335, %v331
    %v388 = vpack.c.b16 %v336, %v332
    %v389 = vpack.c.b16 %v337, %v333
    %v390 = vpack.c.b16 %v338, %v334
    %v391 = vpack.c.b16 %v343, %v339
    %v392 = vpack.c.b16 %v344, %v340
    %v393 = vpack.c.b16 %v345, %v341
    %v394 = vpack.c.b16 %v346, %v342
    %v395 = vpack.c.b16 %v351, %v347
    %v396 = vpack.c.b16 %v352, %v348
    %v397 = vpack.c.b16 %v353, %v349
    %v398 = vpack.c.b16 %v354, %v350
    %v399 = vpack.c.b16 %v359, %v355
    %v400 = vpack.c.b16 %v360, %v356
    %v401 = vpack.c.b16 %v361, %v357
    %v402 = vpack.c.b16 %v362, %v358
    %v403 = vpack.c.b16 %v367, %v363
    %v404 = vpack.c.b16 %v368, %v364
    %v405 = vpack.c.b16 %v369, %v365
    %v406 = vpack.c.b16 %v370, %v366
    %v407 = vpack.c.b16 %v375, %v371
    %v408 = vpack.c.b16 %v376, %v372
    %v409 = vpack.c.b16 %v377, %v373
    %v410 = vpack.c.b16 %v378, %v374
    %443 = vmatpush.bf16.msra.mxu0 %v407
    %444 = vmatpush.bf16.msra.mxu0 %v403
    %445 = vmatpush.bf16.msra.mxu0 %v399
    %446 = vmatpush.bf16.msra.mxu0 %v395
    %447 = vmatpush.bf16.msra.mxu0 %v391
    %448 = vmatpush.bf16.msra.mxu0 %v387
    %449 = vmatpush.bf16.msra.mxu0 %v383
    %450 = vmatpush.bf16.msra.mxu0 %v379
    %451 = vmatmul.bf16.gmra.mxu0 0
    %v452 = vpop.f32.mrf.mxu0
    %v453 = vadd.f32 0.0, %v452
    %v454 = vpop.f32.mrf.mxu0
    %455 = vdwg.mxu0
    %456 = vmatpush.bf16.msra.mxu0 %v408
    %457 = vmatpush.bf16.msra.mxu0 %v404
    %458 = vmatpush.bf16.msra.mxu0 %v400
    %459 = vmatpush.bf16.msra.mxu0 %v396
    %460 = vmatpush.bf16.msra.mxu0 %v392
    %461 = vmatpush.bf16.msra.mxu0 %v388
    %462 = vmatpush.bf16.msra.mxu0 %v384
    %463 = vmatpush.bf16.msra.mxu0 %v380
    %464 = vmatmul.bf16.gmra.mxu0 0
    %v465 = vpop.f32.mrf.mxu0
    %v466 = vadd.f32 0.0, %v465
    %v467 = vpop.f32.mrf.mxu0
    %468 = vdwg.mxu0
    %469 = vmatpush.bf16.msra.mxu0 %v409
    %470 = vmatpush.bf16.msra.mxu0 %v405
    %471 = vmatpush.bf16.msra.mxu0 %v401
    %472 = vmatpush.bf16.msra.mxu0 %v397
    %473 = vmatpush.bf16.msra.mxu0 %v393
    %474 = vmatpush.bf16.msra.mxu0 %v389
    %475 = vmatpush.bf16.msra.mxu0 %v385
    %476 = vmatpush.bf16.msra.mxu0 %v381
    %477 = vmatmul.bf16.gmra.mxu0 0
    %v478 = vpop.f32.mrf.mxu0
    %v479 = vadd.f32 0.0, %v478
    %v480 = vpop.f32.mrf.mxu0
    %481 = vdwg.mxu0
    %482 = vmatpush.bf16.msra.mxu0 %v410
    %483 = vmatpush.bf16.msra.mxu0 %v406
    %484 = vmatpush.bf16.msra.mxu0 %v402
    %485 = vmatpush.bf16.msra.mxu0 %v398
    %486 = vmatpush.bf16.msra.mxu0 %v394
    %487 = vmatpush.bf16.msra.mxu0 %v390
    %488 = vmatpush.bf16.msra.mxu0 %v386
    %489 = vmatpush.bf16.msra.mxu0 %v382
    %490 = vmatmul.bf16.gmra.mxu0 0
    %v491 = vpop.f32.mrf.mxu0
    %v492 = vadd.f32 0.0, %v491
    %v493 = vpop.f32.mrf.mxu0
    %494 = vdwg.mxu0
    %v495 = vadd.f32 %v105, %v453
    %v496 = vadd.f32 %v146, %v466
    %v497 = vadd.f32 %v187, %v479
    %v498 = vadd.f32 %v228, %v492
    %v499 = vxor.u32 %v495, 2147483648
    %v500 = vxor.u32 %v496, 2147483648
    %v501 = vxor.u32 %v497, 2147483648
    %v502 = vmul.f32 %v499, 1.442695
    %v503 = vpow.pop %v502
    %v504 = vmul.f32 %v500, 1.442695
    %v505 = vpow.pop %v504
    %v506 = vmul.f32 %v501, 1.442695
    %v507 = vpow.pop %v506
    %v508 = vadd.f32 %v503, 1.0
    %v509 = vadd.f32 %v505, 1.0
    %v510 = vadd.f32 %v507, 1.0
    %v511 = vrcp.pop %v508
    %v512 = vmul.f32 %v508, %v511
    %v513 = vsub.f32 1.0, %v512
    %v514 = vmul.f32 %v511, %v513
    %v515 = vadd.f32 %v511, %v514
    %vm516 = vweird.f32 %v508
    %vm517 = vweird.f32 %v511
    %vm518 = vmor %vm516, %vm517
    %v519 = vsel %vm518, %v511, %v515
    %v520 = vand.u32 2147483647, %v508
    %vm521 = vcmp.eq.f32.partialorder %v520, 8.507059e+37
    %v522 = vand.u32 %v508, 2147483648
    %v523 = vor.u32 1.1754944e-38, %v522
    %v524 = vsel %vm521, %v523, %v519
    %v525 = vmul.f32 1.0, %v524
    %v526 = vrcp.pop %v509
    %v527 = vmul.f32 %v509, %v526
    %v528 = vsub.f32 1.0, %v527
    %v529 = vmul.f32 %v526, %v528
    %v530 = vadd.f32 %v526, %v529
    %vm531 = vweird.f32 %v509
    %vm532 = vweird.f32 %v526
    %vm533 = vmor %vm531, %vm532
    %v534 = vsel %vm533, %v526, %v530
    %v535 = vand.u32 2147483647, %v509
    %vm536 = vcmp.eq.f32.partialorder %v535, 8.507059e+37
    %v537 = vand.u32 %v509, 2147483648
    %v538 = vor.u32 1.1754944e-38, %v537
    %v539 = vsel %vm536, %v538, %v534
    %v540 = vmul.f32 1.0, %v539
    %v541 = vrcp.pop %v510
    %v542 = vmul.f32 %v510, %v541
    %v543 = vsub.f32 1.0, %v542
    %v544 = vmul.f32 %v541, %v543
    %v545 = vadd.f32 %v541, %v544
    %vm546 = vweird.f32 %v510
    %vm547 = vweird.f32 %v541
    %vm548 = vmor %vm546, %vm547
    %v549 = vsel %vm548, %v541, %v545
    %v550 = vand.u32 2147483647, %v510
    %vm551 = vcmp.eq.f32.partialorder %v550, 8.507059e+37
    %v552 = vand.u32 %v510, 2147483648
    %v553 = vor.u32 1.1754944e-38, %v552
    %v554 = vsel %vm551, %v553, %v549
    %v555 = vmul.f32 1.0, %v554
    %v556 = vtanh.pop %v498
    %v557 = vmul.f32 %v540, 0.0
    %v558 = vmul.f32 %v525, %v556
    %v559 = vadd.f32 %v557, %v558
    %v560 = vtanh.pop %v559
    %v561 = vmul.f32 %v555, %v560
    %v562 = vpack.c.bf16 %v561, %v561
    %563 = vmatpush.bf16.msra.mxu0 %v407
    %564 = vmatpush.bf16.msra.mxu0 %v403
    %565 = vmatpush.bf16.msra.mxu0 %v399
    %566 = vmatpush.bf16.msra.mxu0 %v395
    %567 = vmatpush.bf16.msra.mxu0 %v391
    %568 = vmatpush.bf16.msra.mxu0 %v387
    %569 = vmatpush.bf16.msra.mxu0 %v383
    %570 = vmatpush.bf16.msra.mxu0 %v379
    %571 = vmatmul.bf16.gmra.mxu0 %v562
    %v572 = vpop.f32.mrf.mxu0
    %v573 = vadd.f32 0.0, %v572
    %v574 = vpop.f32.mrf.mxu0
    %575 = vdwg.mxu0
    %576 = vmatpush.bf16.msra.mxu0 %v408
    %577 = vmatpush.bf16.msra.mxu0 %v404
    %578 = vmatpush.bf16.msra.mxu0 %v400
    %579 = vmatpush.bf16.msra.mxu0 %v396
    %580 = vmatpush.bf16.msra.mxu0 %v392
    %581 = vmatpush.bf16.msra.mxu0 %v388
    %582 = vmatpush.bf16.msra.mxu0 %v384
    %583 = vmatpush.bf16.msra.mxu0 %v380
    %584 = vmatmul.bf16.gmra.mxu0 %v562
    %v585 = vpop.f32.mrf.mxu0
    %v586 = vadd.f32 0.0, %v585
    %v587 = vpop.f32.mrf.mxu0
    %588 = vdwg.mxu0
    %589 = vmatpush.bf16.msra.mxu0 %v409
    %590 = vmatpush.bf16.msra.mxu0 %v405
    %591 = vmatpush.bf16.msra.mxu0 %v401
    %592 = vmatpush.bf16.msra.mxu0 %v397
    %593 = vmatpush.bf16.msra.mxu0 %v393
    %594 = vmatpush.bf16.msra.mxu0 %v389
    %595 = vmatpush.bf16.msra.mxu0 %v385
    %596 = vmatpush.bf16.msra.mxu0 %v381
    %597 = vmatmul.bf16.gmra.mxu0 %v562
    %v598 = vpop.f32.mrf.mxu0
    %v599 = vadd.f32 0.0, %v598
    %v600 = vpop.f32.mrf.mxu0
    %601 = vdwg.mxu0
    %602 = vmatpush.bf16.msra.mxu0 %v410
    %603 = vmatpush.bf16.msra.mxu0 %v406
    %604 = vmatpush.bf16.msra.mxu0 %v402
    %605 = vmatpush.bf16.msra.mxu0 %v398
    %606 = vmatpush.bf16.msra.mxu0 %v394
    %607 = vmatpush.bf16.msra.mxu0 %v390
    %608 = vmatpush.bf16.msra.mxu0 %v386
    %609 = vmatpush.bf16.msra.mxu0 %v382
    %610 = vmatmul.bf16.gmra.mxu0 %v562
    %v611 = vpop.f32.mrf.mxu0
    %v612 = vadd.f32 0.0, %v611
    %v613 = vpop.f32.mrf.mxu0
    %614 = vdwg.mxu0
    %v615 = vadd.f32 %v108, %v573
    %v616 = vadd.f32 %v149, %v586
    %v617 = vadd.f32 %v190, %v599
    %v618 = vadd.f32 %v231, %v612
    %v619 = vxor.u32 %v615, 2147483648
    %v620 = vxor.u32 %v616, 2147483648
    %v621 = vxor.u32 %v617, 2147483648
    %v622 = vmul.f32 %v619, 1.442695
    %v623 = vpow.pop %v622
    %v624 = vmul.f32 %v620, 1.442695
    %v625 = vpow.pop %v624
    %v626 = vmul.f32 %v621, 1.442695
    %v627 = vpow.pop %v626
    %v628 = vadd.f32 %v623, 1.0
    %v629 = vadd.f32 %v625, 1.0
    %v630 = vadd.f32 %v627, 1.0
    %v631 = vrcp.pop %v628
    %v632 = vmul.f32 %v628, %v631
    %v633 = vsub.f32 1.0, %v632
    %v634 = vmul.f32 %v631, %v633
    %v635 = vadd.f32 %v631, %v634
    %vm636 = vweird.f32 %v628
    %vm637 = vweird.f32 %v631
    %vm638 = vmor %vm636, %vm637
    %v639 = vsel %vm638, %v631, %v635
    %v640 = vand.u32 2147483647, %v628
    %vm641 = vcmp.eq.f32.partialorder %v640, 8.507059e+37
    %v642 = vand.u32 %v628, 2147483648
    %v643 = vor.u32 1.1754944e-38, %v642
    %v644 = vsel %vm641, %v643, %v639
    %v645 = vmul.f32 1.0, %v644
    %v646 = vrcp.pop %v629
    %v647 = vmul.f32 %v629, %v646
    %v648 = vsub.f32 1.0, %v647
    %v649 = vmul.f32 %v646, %v648
    %v650 = vadd.f32 %v646, %v649
    %vm651 = vweird.f32 %v629
    %vm652 = vweird.f32 %v646
    %vm653 = vmor %vm651, %vm652
    %v654 = vsel %vm653, %v646, %v650
    %v655 = vand.u32 2147483647, %v629
    %vm656 = vcmp.eq.f32.partialorder %v655, 8.507059e+37
    %v657 = vand.u32 %v629, 2147483648
    %v658 = vor.u32 1.1754944e-38, %v657
    %v659 = vsel %vm656, %v658, %v654
    %v660 = vmul.f32 1.0, %v659
    %v661 = vrcp.pop %v630
    %v662 = vmul.f32 %v630, %v661
    %v663 = vsub.f32 1.0, %v662
    %v664 = vmul.f32 %v661, %v663
    %v665 = vadd.f32 %v661, %v664
    %vm666 = vweird.f32 %v630
    %vm667 = vweird.f32 %v661
    %vm668 = vmor %vm666, %vm667
    %v669 = vsel %vm668, %v661, %v665
    %v670 = vand.u32 2147483647, %v630
    %vm671 = vcmp.eq.f32.partialorder %v670, 8.507059e+37
    %v672 = vand.u32 %v630, 2147483648
    %v673 = vor.u32 1.1754944e-38, %v672
    %v674 = vsel %vm671, %v673, %v669
    %v675 = vmul.f32 1.0, %v674
    %v676 = vtanh.pop %v618
    %v677 = vmul.f32 %v660, %v559
    %v678 = vmul.f32 %v645, %v676
    %v679 = vadd.f32 %v677, %v678
    %v680 = vtanh.pop %v679
    %v681 = vmul.f32 %v675, %v680
    %v682 = vpack.c.bf16 %v681, %v681
    %683 = vmatpush.bf16.msra.mxu0 %v407
    %684 = vmatpush.bf16.msra.mxu0 %v403
    %685 = vmatpush.bf16.msra.mxu0 %v399
    %686 = vmatpush.bf16.msra.mxu0 %v395
    %687 = vmatpush.bf16.msra.mxu0 %v391
    %688 = vmatpush.bf16.msra.mxu0 %v387
    %689 = vmatpush.bf16.msra.mxu0 %v383
    %690 = vmatpush.bf16.msra.mxu0 %v379
    %691 = vmatmul.bf16.gmra.mxu0 %v682
    %v692 = vpop.f32.mrf.mxu0
    %v693 = vadd.f32 0.0, %v692
    %v694 = vpop.f32.mrf.mxu0
    %695 = vdwg.mxu0
    %696 = vmatpush.bf16.msra.mxu0 %v408
    %697 = vmatpush.bf16.msra.mxu0 %v404
    %698 = vmatpush.bf16.msra.mxu0 %v400
    %699 = vmatpush.bf16.msra.mxu0 %v396
    %700 = vmatpush.bf16.msra.mxu0 %v392
    %701 = vmatpush.bf16.msra.mxu0 %v388
    %702 = vmatpush.bf16.msra.mxu0 %v384
    %703 = vmatpush.bf16.msra.mxu0 %v380
    %704 = vmatmul.bf16.gmra.mxu0 %v682
    %v705 = vpop.f32.mrf.mxu0
    %v706 = vadd.f32 0.0, %v705
    %v707 = vpop.f32.mrf.mxu0
    %708 = vdwg.mxu0
    %709 = vmatpush.bf16.msra.mxu0 %v409
    %710 = vmatpush.bf16.msra.mxu0 %v405
    %711 = vmatpush.bf16.msra.mxu0 %v401
    %712 = vmatpush.bf16.msra.mxu0 %v397
    %713 = vmatpush.bf16.msra.mxu0 %v393
    %714 = vmatpush.bf16.msra.mxu0 %v389
    %715 = vmatpush.bf16.msra.mxu0 %v385
    %716 = vmatpush.bf16.msra.mxu0 %v381
    %717 = vmatmul.bf16.gmra.mxu0 %v682
    %v718 = vpop.f32.mrf.mxu0
    %v719 = vadd.f32 0.0, %v718
    %v720 = vpop.f32.mrf.mxu0
    %721 = vdwg.mxu0
    %722 = vmatpush.bf16.msra.mxu0 %v410
    %723 = vmatpush.bf16.msra.mxu0 %v406
    %724 = vmatpush.bf16.msra.mxu0 %v402
    %725 = vmatpush.bf16.msra.mxu0 %v398
    %726 = vmatpush.bf16.msra.mxu0 %v394
    %727 = vmatpush.bf16.msra.mxu0 %v390
    %728 = vmatpush.bf16.msra.mxu0 %v386
    %729 = vmatpush.bf16.msra.mxu0 %v382
    %730 = vmatmul.bf16.gmra.mxu0 %v682
    %v731 = vpop.f32.mrf.mxu0
    %v732 = vadd.f32 0.0, %v731
    %v733 = vpop.f32.mrf.mxu0
    %734 = vdwg.mxu0
    %v735 = vadd.f32 %v111, %v693
    %v736 = vadd.f32 %v152, %v706
    %v737 = vadd.f32 %v193, %v719
    %v738 = vadd.f32 %v234, %v732
    %v739 = vxor.u32 %v735, 2147483648
    %v740 = vxor.u32 %v736, 2147483648
    %v741 = vxor.u32 %v737, 2147483648
    %v742 = vmul.f32 %v739, 1.442695
    %v743 = vpow.pop %v742
    %v744 = vmul.f32 %v740, 1.442695
    %v745 = vpow.pop %v744
    %v746 = vmul.f32 %v741, 1.442695
    %v747 = vpow.pop %v746
    %v748 = vadd.f32 %v743, 1.0
    %v749 = vadd.f32 %v745, 1.0
    %v750 = vadd.f32 %v747, 1.0
    %v751 = vrcp.pop %v748
    %v752 = vmul.f32 %v748, %v751
    %v753 = vsub.f32 1.0, %v752
    %v754 = vmul.f32 %v751, %v753
    %v755 = vadd.f32 %v751, %v754
    %vm756 = vweird.f32 %v748
    %vm757 = vweird.f32 %v751
    %vm758 = vmor %vm756, %vm757
    %v759 = vsel %vm758, %v751, %v755
    %v760 = vand.u32 2147483647, %v748
    %vm761 = vcmp.eq.f32.partialorder %v760, 8.507059e+37
    %v762 = vand.u32 %v748, 2147483648
    %v763 = vor.u32 1.1754944e-38, %v762
    %v764 = vsel %vm761, %v763, %v759
    %v765 = vmul.f32 1.0, %v764
    %v766 = vrcp.pop %v749
    %v767 = vmul.f32 %v749, %v766
    %v768 = vsub.f32 1.0, %v767
    %v769 = vmul.f32 %v766, %v768
    %v770 = vadd.f32 %v766, %v769
    %vm771 = vweird.f32 %v749
    %vm772 = vweird.f32 %v766
    %vm773 = vmor %vm771, %vm772
    %v774 = vsel %vm773, %v766, %v770
    %v775 = vand.u32 2147483647, %v749
    %vm776 = vcmp.eq.f32.partialorder %v775, 8.507059e+37
    %v777 = vand.u32 %v749, 2147483648
    %v778 = vor.u32 1.1754944e-38, %v777
    %v779 = vsel %vm776, %v778, %v774
    %v780 = vmul.f32 1.0, %v779
    %v781 = vrcp.pop %v750
    %v782 = vmul.f32 %v750, %v781
    %v783 = vsub.f32 1.0, %v782
    %v784 = vmul.f32 %v781, %v783
    %v785 = vadd.f32 %v781, %v784
    %vm786 = vweird.f32 %v750
    %vm787 = vweird.f32 %v781
    %vm788 = vmor %vm786, %vm787
    %v789 = vsel %vm788, %v781, %v785
    %v790 = vand.u32 2147483647, %v750
    %vm791 = vcmp.eq.f32.partialorder %v790, 8.507059e+37
    %v792 = vand.u32 %v750, 2147483648
    %v793 = vor.u32 1.1754944e-38, %v792
    %v794 = vsel %vm791, %v793, %v789
    %v795 = vmul.f32 1.0, %v794
    %v796 = vtanh.pop %v738
    %v797 = vmul.f32 %v780, %v679
    %v798 = vmul.f32 %v765, %v796
    %v799 = vadd.f32 %v797, %v798
    %v800 = vtanh.pop %v799
    %v801 = vmul.f32 %v795, %v800
    %v802 = vpack.c.bf16 %v801, %v801
    %803 = vmatpush.bf16.msra.mxu0 %v407
    %804 = vmatpush.bf16.msra.mxu0 %v403
    %805 = vmatpush.bf16.msra.mxu0 %v399
    %806 = vmatpush.bf16.msra.mxu0 %v395
    %807 = vmatpush.bf16.msra.mxu0 %v391
    %808 = vmatpush.bf16.msra.mxu0 %v387
    %809 = vmatpush.bf16.msra.mxu0 %v383
    %810 = vmatpush.bf16.msra.mxu0 %v379
    %811 = vmatmul.bf16.gmra.mxu0 %v802
    %v812 = vpop.f32.mrf.mxu0
    %v813 = vadd.f32 0.0, %v812
    %v814 = vpop.f32.mrf.mxu0
    %815 = vdwg.mxu0
    %816 = vmatpush.bf16.msra.mxu0 %v408
    %817 = vmatpush.bf16.msra.mxu0 %v404
    %818 = vmatpush.bf16.msra.mxu0 %v400
    %819 = vmatpush.bf16.msra.mxu0 %v396
    %820 = vmatpush.bf16.msra.mxu0 %v392
    %821 = vmatpush.bf16.msra.mxu0 %v388
    %822 = vmatpush.bf16.msra.mxu0 %v384
    %823 = vmatpush.bf16.msra.mxu0 %v380
    %824 = vmatmul.bf16.gmra.mxu0 %v802
    %v825 = vpop.f32.mrf.mxu0
    %v826 = vadd.f32 0.0, %v825
    %v827 = vpop.f32.mrf.mxu0
    %828 = vdwg.mxu0
    %829 = vmatpush.bf16.msra.mxu0 %v409
    %830 = vmatpush.bf16.msra.mxu0 %v405
    %831 = vmatpush.bf16.msra.mxu0 %v401
    %832 = vmatpush.bf16.msra.mxu0 %v397
    %833 = vmatpush.bf16.msra.mxu0 %v393
    %834 = vmatpush.bf16.msra.mxu0 %v389
    %835 = vmatpush.bf16.msra.mxu0 %v385
    %836 = vmatpush.bf16.msra.mxu0 %v381
    %837 = vmatmul.bf16.gmra.mxu0 %v802
    %v838 = vpop.f32.mrf.mxu0
    %v839 = vadd.f32 0.0, %v838
    %v840 = vpop.f32.mrf.mxu0
    %841 = vdwg.mxu0
    %842 = vmatpush.bf16.msra.mxu0 %v410
    %843 = vmatpush.bf16.msra.mxu0 %v406
    %844 = vmatpush.bf16.msra.mxu0 %v402
    %845 = vmatpush.bf16.msra.mxu0 %v398
    %846 = vmatpush.bf16.msra.mxu0 %v394
    %847 = vmatpush.bf16.msra.mxu0 %v390
    %848 = vmatpush.bf16.msra.mxu0 %v386
    %849 = vmatpush.bf16.msra.mxu0 %v382
    %850 = vmatmul.bf16.gmra.mxu0 %v802
    %v851 = vpop.f32.mrf.mxu0
    %v852 = vadd.f32 0.0, %v851
    %v853 = vpop.f32.mrf.mxu0
    %854 = vdwg.mxu0
    %v855 = vadd.f32 %v114, %v813
    %v856 = vadd.f32 %v155, %v826
    %v857 = vadd.f32 %v196, %v839
    %v858 = vadd.f32 %v237, %v852
    %v859 = vxor.u32 %v855, 2147483648
    %v860 = vxor.u32 %v856, 2147483648
    %v861 = vxor.u32 %v857, 2147483648
    %v862 = vmul.f32 %v859, 1.442695
    %v863 = vpow.pop %v862
    %v864 = vmul.f32 %v860, 1.442695
    %v865 = vpow.pop %v864
    %v866 = vmul.f32 %v861, 1.442695
    %v867 = vpow.pop %v866
    %v868 = vadd.f32 %v863, 1.0
    %v869 = vadd.f32 %v865, 1.0
    %v870 = vadd.f32 %v867, 1.0
    %v871 = vrcp.pop %v868
    %v872 = vmul.f32 %v868, %v871
    %v873 = vsub.f32 1.0, %v872
    %v874 = vmul.f32 %v871, %v873
    %v875 = vadd.f32 %v871, %v874
    %vm876 = vweird.f32 %v868
    %vm877 = vweird.f32 %v871
    %vm878 = vmor %vm876, %vm877
    %v879 = vsel %vm878, %v871, %v875
    %v880 = vand.u32 2147483647, %v868
    %vm881 = vcmp.eq.f32.partialorder %v880, 8.507059e+37
    %v882 = vand.u32 %v868, 2147483648
    %v883 = vor.u32 1.1754944e-38, %v882
    %v884 = vsel %vm881, %v883, %v879
    %v885 = vmul.f32 1.0, %v884
    %v886 = vrcp.pop %v869
    %v887 = vmul.f32 %v869, %v886
    %v888 = vsub.f32 1.0, %v887
    %v889 = vmul.f32 %v886, %v888
    %v890 = vadd.f32 %v886, %v889
    %vm891 = vweird.f32 %v869
    %vm892 = vweird.f32 %v886
    %vm893 = vmor %vm891, %vm892
    %v894 = vsel %vm893, %v886, %v890
    %v895 = vand.u32 2147483647, %v869
    %vm896 = vcmp.eq.f32.partialorder %v895, 8.507059e+37
    %v897 = vand.u32 %v869, 2147483648
    %v898 = vor.u32 1.1754944e-38, %v897
    %v899 = vsel %vm896, %v898, %v894
    %v900 = vmul.f32 1.0, %v899
    %v901 = vrcp.pop %v870
    %v902 = vmul.f32 %v870, %v901
    %v903 = vsub.f32 1.0, %v902
    %v904 = vmul.f32 %v901, %v903
    %v905 = vadd.f32 %v901, %v904
    %vm906 = vweird.f32 %v870
    %vm907 = vweird.f32 %v901
    %vm908 = vmor %vm906, %vm907
    %v909 = vsel %vm908, %v901, %v905
    %v910 = vand.u32 2147483647, %v870
    %vm911 = vcmp.eq.f32.partialorder %v910, 8.507059e+37
    %v912 = vand.u32 %v870, 2147483648
    %v913 = vor.u32 1.1754944e-38, %v912
    %v914 = vsel %vm911, %v913, %v909
    %v915 = vmul.f32 1.0, %v914
    %v916 = vtanh.pop %v858
    %v917 = vmul.f32 %v900, %v799
    %v918 = vmul.f32 %v885, %v916
    %v919 = vadd.f32 %v917, %v918
    %v920 = vtanh.pop %v919
    %v921 = vmul.f32 %v915, %v920
    %v922 = vpack.c.bf16 %v921, %v921
    %923 = vmatpush.bf16.msra.mxu0 %v407
    %924 = vmatpush.bf16.msra.mxu0 %v403
    %925 = vmatpush.bf16.msra.mxu0 %v399
    %926 = vmatpush.bf16.msra.mxu0 %v395
    %927 = vmatpush.bf16.msra.mxu0 %v391
    %928 = vmatpush.bf16.msra.mxu0 %v387
    %929 = vmatpush.bf16.msra.mxu0 %v383
    %930 = vmatpush.bf16.msra.mxu0 %v379
    %931 = vmatmul.bf16.gmra.mxu0 %v922
    %v932 = vpop.f32.mrf.mxu0
    %v933 = vadd.f32 0.0, %v932
    %v934 = vpop.f32.mrf.mxu0
    %935 = vdwg.mxu0
    %936 = vmatpush.bf16.msra.mxu0 %v408
    %937 = vmatpush.bf16.msra.mxu0 %v404
    %938 = vmatpush.bf16.msra.mxu0 %v400
    %939 = vmatpush.bf16.msra.mxu0 %v396
    %940 = vmatpush.bf16.msra.mxu0 %v392
    %941 = vmatpush.bf16.msra.mxu0 %v388
    %942 = vmatpush.bf16.msra.mxu0 %v384
    %943 = vmatpush.bf16.msra.mxu0 %v380
    %944 = vmatmul.bf16.gmra.mxu0 %v922
    %v945 = vpop.f32.mrf.mxu0
    %v946 = vadd.f32 0.0, %v945
    %v947 = vpop.f32.mrf.mxu0
    %948 = vdwg.mxu0
    %949 = vmatpush.bf16.msra.mxu0 %v409
    %950 = vmatpush.bf16.msra.mxu0 %v405
    %951 = vmatpush.bf16.msra.mxu0 %v401
    %952 = vmatpush.bf16.msra.mxu0 %v397
    %953 = vmatpush.bf16.msra.mxu0 %v393
    %954 = vmatpush.bf16.msra.mxu0 %v389
    %955 = vmatpush.bf16.msra.mxu0 %v385
    %956 = vmatpush.bf16.msra.mxu0 %v381
    %957 = vmatmul.bf16.gmra.mxu0 %v922
    %v958 = vpop.f32.mrf.mxu0
    %v959 = vadd.f32 0.0, %v958
    %v960 = vpop.f32.mrf.mxu0
    %961 = vdwg.mxu0
    %962 = vmatpush.bf16.msra.mxu0 %v410
    %963 = vmatpush.bf16.msra.mxu0 %v406
    %964 = vmatpush.bf16.msra.mxu0 %v402
    %965 = vmatpush.bf16.msra.mxu0 %v398
    %966 = vmatpush.bf16.msra.mxu0 %v394
    %967 = vmatpush.bf16.msra.mxu0 %v390
    %968 = vmatpush.bf16.msra.mxu0 %v386
    %969 = vmatpush.bf16.msra.mxu0 %v382
    %970 = vmatmul.bf16.gmra.mxu0 %v922
    %v971 = vpop.f32.mrf.mxu0
    %v972 = vadd.f32 0.0, %v971
    %v973 = vpop.f32.mrf.mxu0
    %974 = vdwg.mxu0
    %v975 = vadd.f32 %v117, %v933
    %v976 = vadd.f32 %v158, %v946
    %v977 = vadd.f32 %v199, %v959
    %v978 = vadd.f32 %v240, %v972
    %v979 = vxor.u32 %v975, 2147483648
    %v980 = vxor.u32 %v976, 2147483648
    %v981 = vxor.u32 %v977, 2147483648
    %v982 = vmul.f32 %v979, 1.442695
    %v983 = vpow.pop %v982
    %v984 = vmul.f32 %v980, 1.442695
    %v985 = vpow.pop %v984
    %v986 = vmul.f32 %v981, 1.442695
    %v987 = vpow.pop %v986
    %v988 = vadd.f32 %v983, 1.0
    %v989 = vadd.f32 %v985, 1.0
    %v990 = vadd.f32 %v987, 1.0
    %v991 = vrcp.pop %v988
    %v992 = vmul.f32 %v988, %v991
    %v993 = vsub.f32 1.0, %v992
    %v994 = vmul.f32 %v991, %v993
    %v995 = vadd.f32 %v991, %v994
    %vm996 = vweird.f32 %v988
    %vm997 = vweird.f32 %v991
    %vm998 = vmor %vm996, %vm997
    %v999 = vsel %vm998, %v991, %v995
    %v1000 = vand.u32 2147483647, %v988
    %vm1001 = vcmp.eq.f32.partialorder %v1000, 8.507059e+37
    %v1002 = vand.u32 %v988, 2147483648
    %v1003 = vor.u32 1.1754944e-38, %v1002
    %v1004 = vsel %vm1001, %v1003, %v999
    %v1005 = vmul.f32 1.0, %v1004
    %v1006 = vrcp.pop %v989
    %v1007 = vmul.f32 %v989, %v1006
    %v1008 = vsub.f32 1.0, %v1007
    %v1009 = vmul.f32 %v1006, %v1008
    %v1010 = vadd.f32 %v1006, %v1009
    %vm1011 = vweird.f32 %v989
    %vm1012 = vweird.f32 %v1006
    %vm1013 = vmor %vm1011, %vm1012
    %v1014 = vsel %vm1013, %v1006, %v1010
    %v1015 = vand.u32 2147483647, %v989
    %vm1016 = vcmp.eq.f32.partialorder %v1015, 8.507059e+37
    %v1017 = vand.u32 %v989, 2147483648
    %v1018 = vor.u32 1.1754944e-38, %v1017
    %v1019 = vsel %vm1016, %v1018, %v1014
    %v1020 = vmul.f32 1.0, %v1019
    %v1021 = vrcp.pop %v990
    %v1022 = vmul.f32 %v990, %v1021
    %v1023 = vsub.f32 1.0, %v1022
    %v1024 = vmul.f32 %v1021, %v1023
    %v1025 = vadd.f32 %v1021, %v1024
    %vm1026 = vweird.f32 %v990
    %vm1027 = vweird.f32 %v1021
    %vm1028 = vmor %vm1026, %vm1027
    %v1029 = vsel %vm1028, %v1021, %v1025
    %v1030 = vand.u32 2147483647, %v990
    %vm1031 = vcmp.eq.f32.partialorder %v1030, 8.507059e+37
    %v1032 = vand.u32 %v990, 2147483648
    %v1033 = vor.u32 1.1754944e-38, %v1032
    %v1034 = vsel %vm1031, %v1033, %v1029
    %v1035 = vmul.f32 1.0, %v1034
    %v1036 = vtanh.pop %v978
    %v1037 = vmul.f32 %v1020, %v919
    %v1038 = vmul.f32 %v1005, %v1036
    %v1039 = vadd.f32 %v1037, %v1038
    %v1040 = vtanh.pop %v1039
    %v1041 = vmul.f32 %v1035, %v1040
    %v1042 = vpack.c.bf16 %v1041, %v1041
    %1043 = vmatpush.bf16.msra.mxu0 %v407
    %1044 = vmatpush.bf16.msra.mxu0 %v403
    %1045 = vmatpush.bf16.msra.mxu0 %v399
    %1046 = vmatpush.bf16.msra.mxu0 %v395
    %1047 = vmatpush.bf16.msra.mxu0 %v391
    %1048 = vmatpush.bf16.msra.mxu0 %v387
    %1049 = vmatpush.bf16.msra.mxu0 %v383
    %1050 = vmatpush.bf16.msra.mxu0 %v379
    %1051 = vmatmul.bf16.gmra.mxu0 %v1042
    %v1052 = vpop.f32.mrf.mxu0
    %v1053 = vadd.f32 0.0, %v1052
    %v1054 = vpop.f32.mrf.mxu0
    %1055 = vdwg.mxu0
    %1056 = vmatpush.bf16.msra.mxu0 %v408
    %1057 = vmatpush.bf16.msra.mxu0 %v404
    %1058 = vmatpush.bf16.msra.mxu0 %v400
    %1059 = vmatpush.bf16.msra.mxu0 %v396
    %1060 = vmatpush.bf16.msra.mxu0 %v392
    %1061 = vmatpush.bf16.msra.mxu0 %v388
    %1062 = vmatpush.bf16.msra.mxu0 %v384
    %1063 = vmatpush.bf16.msra.mxu0 %v380
    %1064 = vmatmul.bf16.gmra.mxu0 %v1042
    %v1065 = vpop.f32.mrf.mxu0
    %v1066 = vadd.f32 0.0, %v1065
    %v1067 = vpop.f32.mrf.mxu0
    %1068 = vdwg.mxu0
    %1069 = vmatpush.bf16.msra.mxu0 %v409
    %1070 = vmatpush.bf16.msra.mxu0 %v405
    %1071 = vmatpush.bf16.msra.mxu0 %v401
    %1072 = vmatpush.bf16.msra.mxu0 %v397
    %1073 = vmatpush.bf16.msra.mxu0 %v393
    %1074 = vmatpush.bf16.msra.mxu0 %v389
    %1075 = vmatpush.bf16.msra.mxu0 %v385
    %1076 = vmatpush.bf16.msra.mxu0 %v381
    %1077 = vmatmul.bf16.gmra.mxu0 %v1042
    %v1078 = vpop.f32.mrf.mxu0
    %v1079 = vadd.f32 0.0, %v1078
    %v1080 = vpop.f32.mrf.mxu0
    %1081 = vdwg.mxu0
    %1082 = vmatpush.bf16.msra.mxu0 %v410
    %1083 = vmatpush.bf16.msra.mxu0 %v406
    %1084 = vmatpush.bf16.msra.mxu0 %v402
    %1085 = vmatpush.bf16.msra.mxu0 %v398
    %1086 = vmatpush.bf16.msra.mxu0 %v394
    %1087 = vmatpush.bf16.msra.mxu0 %v390
    %1088 = vmatpush.bf16.msra.mxu0 %v386
    %1089 = vmatpush.bf16.msra.mxu0 %v382
    %1090 = vmatmul.bf16.gmra.mxu0 %v1042
    %v1091 = vpop.f32.mrf.mxu0
    %v1092 = vadd.f32 0.0, %v1091
    %v1093 = vpop.f32.mrf.mxu0
    %1094 = vdwg.mxu0
    %v1095 = vadd.f32 %v120, %v1053
    %v1096 = vadd.f32 %v161, %v1066
    %v1097 = vadd.f32 %v202, %v1079
    %v1098 = vadd.f32 %v243, %v1092
    %v1099 = vxor.u32 %v1095, 2147483648
    %v1100 = vxor.u32 %v1096, 2147483648
    %v1101 = vxor.u32 %v1097, 2147483648
    %v1102 = vmul.f32 %v1099, 1.442695
    %v1103 = vpow.pop %v1102
    %v1104 = vmul.f32 %v1100, 1.442695
    %v1105 = vpow.pop %v1104
    %v1106 = vmul.f32 %v1101, 1.442695
    %v1107 = vpow.pop %v1106
    %v1108 = vadd.f32 %v1103, 1.0
    %v1109 = vadd.f32 %v1105, 1.0
    %v1110 = vadd.f32 %v1107, 1.0
    %v1111 = vrcp.pop %v1108
    %v1112 = vmul.f32 %v1108, %v1111
    %v1113 = vsub.f32 1.0, %v1112
    %v1114 = vmul.f32 %v1111, %v1113
    %v1115 = vadd.f32 %v1111, %v1114
    %vm1116 = vweird.f32 %v1108
    %vm1117 = vweird.f32 %v1111
    %vm1118 = vmor %vm1116, %vm1117
    %v1119 = vsel %vm1118, %v1111, %v1115
    %v1120 = vand.u32 2147483647, %v1108
    %vm1121 = vcmp.eq.f32.partialorder %v1120, 8.507059e+37
    %v1122 = vand.u32 %v1108, 2147483648
    %v1123 = vor.u32 1.1754944e-38, %v1122
    %v1124 = vsel %vm1121, %v1123, %v1119
    %v1125 = vmul.f32 1.0, %v1124
    %v1126 = vrcp.pop %v1109
    %v1127 = vmul.f32 %v1109, %v1126
    %v1128 = vsub.f32 1.0, %v1127
    %v1129 = vmul.f32 %v1126, %v1128
    %v1130 = vadd.f32 %v1126, %v1129
    %vm1131 = vweird.f32 %v1109
    %vm1132 = vweird.f32 %v1126
    %vm1133 = vmor %vm1131, %vm1132
    %v1134 = vsel %vm1133, %v1126, %v1130
    %v1135 = vand.u32 2147483647, %v1109
    %vm1136 = vcmp.eq.f32.partialorder %v1135, 8.507059e+37
    %v1137 = vand.u32 %v1109, 2147483648
    %v1138 = vor.u32 1.1754944e-38, %v1137
    %v1139 = vsel %vm1136, %v1138, %v1134
    %v1140 = vmul.f32 1.0, %v1139
    %v1141 = vrcp.pop %v1110
    %v1142 = vmul.f32 %v1110, %v1141
    %v1143 = vsub.f32 1.0, %v1142
    %v1144 = vmul.f32 %v1141, %v1143
    %v1145 = vadd.f32 %v1141, %v1144
    %vm1146 = vweird.f32 %v1110
    %vm1147 = vweird.f32 %v1141
    %vm1148 = vmor %vm1146, %vm1147
    %v1149 = vsel %vm1148, %v1141, %v1145
    %v1150 = vand.u32 2147483647, %v1110
    %vm1151 = vcmp.eq.f32.partialorder %v1150, 8.507059e+37
    %v1152 = vand.u32 %v1110, 2147483648
    %v1153 = vor.u32 1.1754944e-38, %v1152
    %v1154 = vsel %vm1151, %v1153, %v1149
    %v1155 = vmul.f32 1.0, %v1154
    %v1156 = vtanh.pop %v1098
    %v1157 = vmul.f32 %v1140, %v1039
    %v1158 = vmul.f32 %v1125, %v1156
    %v1159 = vadd.f32 %v1157, %v1158
    %v1160 = vtanh.pop %v1159
    %v1161 = vmul.f32 %v1155, %v1160
    %v1162 = vpack.c.bf16 %v1161, %v1161
    %1163 = vmatpush.bf16.msra.mxu0 %v407
    %1164 = vmatpush.bf16.msra.mxu0 %v403
    %1165 = vmatpush.bf16.msra.mxu0 %v399
    %1166 = vmatpush.bf16.msra.mxu0 %v395
    %1167 = vmatpush.bf16.msra.mxu0 %v391
    %1168 = vmatpush.bf16.msra.mxu0 %v387
    %1169 = vmatpush.bf16.msra.mxu0 %v383
    %1170 = vmatpush.bf16.msra.mxu0 %v379
    %1171 = vmatmul.bf16.gmra.mxu0 %v1162
    %v1172 = vpop.f32.mrf.mxu0
    %v1173 = vadd.f32 0.0, %v1172
    %v1174 = vpop.f32.mrf.mxu0
    %1175 = vdwg.mxu0
    %1176 = vmatpush.bf16.msra.mxu0 %v408
    %1177 = vmatpush.bf16.msra.mxu0 %v404
    %1178 = vmatpush.bf16.msra.mxu0 %v400
    %1179 = vmatpush.bf16.msra.mxu0 %v396
    %1180 = vmatpush.bf16.msra.mxu0 %v392
    %1181 = vmatpush.bf16.msra.mxu0 %v388
    %1182 = vmatpush.bf16.msra.mxu0 %v384
    %1183 = vmatpush.bf16.msra.mxu0 %v380
    %1184 = vmatmul.bf16.gmra.mxu0 %v1162
    %v1185 = vpop.f32.mrf.mxu0
    %v1186 = vadd.f32 0.0, %v1185
    %v1187 = vpop.f32.mrf.mxu0
    %1188 = vdwg.mxu0
    %1189 = vmatpush.bf16.msra.mxu0 %v409
    %1190 = vmatpush.bf16.msra.mxu0 %v405
    %1191 = vmatpush.bf16.msra.mxu0 %v401
    %1192 = vmatpush.bf16.msra.mxu0 %v397
    %1193 = vmatpush.bf16.msra.mxu0 %v393
    %1194 = vmatpush.bf16.msra.mxu0 %v389
    %1195 = vmatpush.bf16.msra.mxu0 %v385
    %1196 = vmatpush.bf16.msra.mxu0 %v381
    %1197 = vmatmul.bf16.gmra.mxu0 %v1162
    %v1198 = vpop.f32.mrf.mxu0
    %v1199 = vadd.f32 0.0, %v1198
    %v1200 = vpop.f32.mrf.mxu0
    %1201 = vdwg.mxu0
    %1202 = vmatpush.bf16.msra.mxu0 %v410
    %1203 = vmatpush.bf16.msra.mxu0 %v406
    %1204 = vmatpush.bf16.msra.mxu0 %v402
    %1205 = vmatpush.bf16.msra.mxu0 %v398
    %1206 = vmatpush.bf16.msra.mxu0 %v394
    %1207 = vmatpush.bf16.msra.mxu0 %v390
    %1208 = vmatpush.bf16.msra.mxu0 %v386
    %1209 = vmatpush.bf16.msra.mxu0 %v382
    %1210 = vmatmul.bf16.gmra.mxu0 %v1162
    %v1211 = vpop.f32.mrf.mxu0
    %v1212 = vadd.f32 0.0, %v1211
    %v1213 = vpop.f32.mrf.mxu0
    %1214 = vdwg.mxu0
    %v1215 = vadd.f32 %v123, %v1173
    %v1216 = vadd.f32 %v164, %v1186
    %v1217 = vadd.f32 %v205, %v1199
    %v1218 = vadd.f32 %v246, %v1212
    %v1219 = vxor.u32 %v1215, 2147483648
    %v1220 = vxor.u32 %v1216, 2147483648
    %v1221 = vxor.u32 %v1217, 2147483648
    %v1222 = vmul.f32 %v1219, 1.442695
    %v1223 = vpow.pop %v1222
    %v1224 = vmul.f32 %v1220, 1.442695
    %v1225 = vpow.pop %v1224
    %v1226 = vmul.f32 %v1221, 1.442695
    %v1227 = vpow.pop %v1226
    %v1228 = vadd.f32 %v1223, 1.0
    %v1229 = vadd.f32 %v1225, 1.0
    %v1230 = vadd.f32 %v1227, 1.0
    %v1231 = vrcp.pop %v1228
    %v1232 = vmul.f32 %v1228, %v1231
    %v1233 = vsub.f32 1.0, %v1232
    %v1234 = vmul.f32 %v1231, %v1233
    %v1235 = vadd.f32 %v1231, %v1234
    %vm1236 = vweird.f32 %v1228
    %vm1237 = vweird.f32 %v1231
    %vm1238 = vmor %vm1236, %vm1237
    %v1239 = vsel %vm1238, %v1231, %v1235
    %v1240 = vand.u32 2147483647, %v1228
    %vm1241 = vcmp.eq.f32.partialorder %v1240, 8.507059e+37
    %v1242 = vand.u32 %v1228, 2147483648
    %v1243 = vor.u32 1.1754944e-38, %v1242
    %v1244 = vsel %vm1241, %v1243, %v1239
    %v1245 = vmul.f32 1.0, %v1244
    %v1246 = vrcp.pop %v1229
    %v1247 = vmul.f32 %v1229, %v1246
    %v1248 = vsub.f32 1.0, %v1247
    %v1249 = vmul.f32 %v1246, %v1248
    %v1250 = vadd.f32 %v1246, %v1249
    %vm1251 = vweird.f32 %v1229
    %vm1252 = vweird.f32 %v1246
    %vm1253 = vmor %vm1251, %vm1252
    %v1254 = vsel %vm1253, %v1246, %v1250
    %v1255 = vand.u32 2147483647, %v1229
    %vm1256 = vcmp.eq.f32.partialorder %v1255, 8.507059e+37
    %v1257 = vand.u32 %v1229, 2147483648
    %v1258 = vor.u32 1.1754944e-38, %v1257
    %v1259 = vsel %vm1256, %v1258, %v1254
    %v1260 = vmul.f32 1.0, %v1259
    %v1261 = vrcp.pop %v1230
    %v1262 = vmul.f32 %v1230, %v1261
    %v1263 = vsub.f32 1.0, %v1262
    %v1264 = vmul.f32 %v1261, %v1263
    %v1265 = vadd.f32 %v1261, %v1264
    %vm1266 = vweird.f32 %v1230
    %vm1267 = vweird.f32 %v1261
    %vm1268 = vmor %vm1266, %vm1267
    %v1269 = vsel %vm1268, %v1261, %v1265
    %v1270 = vand.u32 2147483647, %v1230
    %vm1271 = vcmp.eq.f32.partialorder %v1270, 8.507059e+37
    %v1272 = vand.u32 %v1230, 2147483648
    %v1273 = vor.u32 1.1754944e-38, %v1272
    %v1274 = vsel %vm1271, %v1273, %v1269
    %v1275 = vmul.f32 1.0, %v1274
    %v1276 = vtanh.pop %v1218
    %v1277 = vmul.f32 %v1260, %v1159
    %v1278 = vmul.f32 %v1245, %v1276
    %v1279 = vadd.f32 %v1277, %v1278
    %v1280 = vtanh.pop %v1279
    %v1281 = vmul.f32 %v1275, %v1280
    %v1282 = vpack.c.bf16 %v1281, %v1281
    %1283 = vmatpush.bf16.msra.mxu0 %v407
    %1284 = vmatpush.bf16.msra.mxu0 %v403
    %1285 = vmatpush.bf16.msra.mxu0 %v399
    %1286 = vmatpush.bf16.msra.mxu0 %v395
    %1287 = vmatpush.bf16.msra.mxu0 %v391
    %1288 = vmatpush.bf16.msra.mxu0 %v387
    %1289 = vmatpush.bf16.msra.mxu0 %v383
    %1290 = vmatpush.bf16.msra.mxu0 %v379
    %1291 = vmatmul.bf16.gmra.mxu0 %v1282
    %v1292 = vpop.f32.mrf.mxu0
    %v1293 = vadd.f32 0.0, %v1292
    %v1294 = vpop.f32.mrf.mxu0
    %1295 = vdwg.mxu0
    %1296 = vmatpush.bf16.msra.mxu0 %v408
    %1297 = vmatpush.bf16.msra.mxu0 %v404
    %1298 = vmatpush.bf16.msra.mxu0 %v400
    %1299 = vmatpush.bf16.msra.mxu0 %v396
    %1300 = vmatpush.bf16.msra.mxu0 %v392
    %1301 = vmatpush.bf16.msra.mxu0 %v388
    %1302 = vmatpush.bf16.msra.mxu0 %v384
    %1303 = vmatpush.bf16.msra.mxu0 %v380
    %1304 = vmatmul.bf16.gmra.mxu0 %v1282
    %v1305 = vpop.f32.mrf.mxu0
    %v1306 = vadd.f32 0.0, %v1305
    %v1307 = vpop.f32.mrf.mxu0
    %1308 = vdwg.mxu0
    %1309 = vmatpush.bf16.msra.mxu0 %v409
    %1310 = vmatpush.bf16.msra.mxu0 %v405
    %1311 = vmatpush.bf16.msra.mxu0 %v401
    %1312 = vmatpush.bf16.msra.mxu0 %v397
    %1313 = vmatpush.bf16.msra.mxu0 %v393
    %1314 = vmatpush.bf16.msra.mxu0 %v389
    %1315 = vmatpush.bf16.msra.mxu0 %v385
    %1316 = vmatpush.bf16.msra.mxu0 %v381
    %1317 = vmatmul.bf16.gmra.mxu0 %v1282
    %v1318 = vpop.f32.mrf.mxu0
    %v1319 = vadd.f32 0.0, %v1318
    %v1320 = vpop.f32.mrf.mxu0
    %1321 = vdwg.mxu0
    %1322 = vmatpush.bf16.msra.mxu0 %v410
    %1323 = vmatpush.bf16.msra.mxu0 %v406
    %1324 = vmatpush.bf16.msra.mxu0 %v402
    %1325 = vmatpush.bf16.msra.mxu0 %v398
    %1326 = vmatpush.bf16.msra.mxu0 %v394
    %1327 = vmatpush.bf16.msra.mxu0 %v390
    %1328 = vmatpush.bf16.msra.mxu0 %v386
    %1329 = vmatpush.bf16.msra.mxu0 %v382
    %1330 = vmatmul.bf16.gmra.mxu0 %v1282
    %v1331 = vpop.f32.mrf.mxu0
    %v1332 = vadd.f32 0.0, %v1331
    %v1333 = vpop.f32.mrf.mxu0
    %1334 = vdwg.mxu0
    %v1335 = vadd.f32 %v126, %v1293
    %v1336 = vadd.f32 %v167, %v1306
    %v1337 = vadd.f32 %v208, %v1319
    %v1338 = vadd.f32 %v249, %v1332
    %v1339 = vxor.u32 %v1335, 2147483648
    %v1340 = vxor.u32 %v1336, 2147483648
    %v1341 = vxor.u32 %v1337, 2147483648
    %v1342 = vmul.f32 %v1339, 1.442695
    %v1343 = vpow.pop %v1342
    %v1344 = vmul.f32 %v1340, 1.442695
    %v1345 = vpow.pop %v1344
    %v1346 = vmul.f32 %v1341, 1.442695
    %v1347 = vpow.pop %v1346
    %v1348 = vadd.f32 %v1343, 1.0
    %v1349 = vadd.f32 %v1345, 1.0
    %v1350 = vadd.f32 %v1347, 1.0
    %v1351 = vrcp.pop %v1348
    %v1352 = vmul.f32 %v1348, %v1351
    %v1353 = vsub.f32 1.0, %v1352
    %v1354 = vmul.f32 %v1351, %v1353
    %v1355 = vadd.f32 %v1351, %v1354
    %vm1356 = vweird.f32 %v1348
    %vm1357 = vweird.f32 %v1351
    %vm1358 = vmor %vm1356, %vm1357
    %v1359 = vsel %vm1358, %v1351, %v1355
    %v1360 = vand.u32 2147483647, %v1348
    %vm1361 = vcmp.eq.f32.partialorder %v1360, 8.507059e+37
    %v1362 = vand.u32 %v1348, 2147483648
    %v1363 = vor.u32 1.1754944e-38, %v1362
    %v1364 = vsel %vm1361, %v1363, %v1359
    %v1365 = vmul.f32 1.0, %v1364
    %v1366 = vrcp.pop %v1349
    %v1367 = vmul.f32 %v1349, %v1366
    %v1368 = vsub.f32 1.0, %v1367
    %v1369 = vmul.f32 %v1366, %v1368
    %v1370 = vadd.f32 %v1366, %v1369
    %vm1371 = vweird.f32 %v1349
    %vm1372 = vweird.f32 %v1366
    %vm1373 = vmor %vm1371, %vm1372
    %v1374 = vsel %vm1373, %v1366, %v1370
    %v1375 = vand.u32 2147483647, %v1349
    %vm1376 = vcmp.eq.f32.partialorder %v1375, 8.507059e+37
    %v1377 = vand.u32 %v1349, 2147483648
    %v1378 = vor.u32 1.1754944e-38, %v1377
    %v1379 = vsel %vm1376, %v1378, %v1374
    %v1380 = vmul.f32 1.0, %v1379
    %v1381 = vrcp.pop %v1350
    %v1382 = vmul.f32 %v1350, %v1381
    %v1383 = vsub.f32 1.0, %v1382
    %v1384 = vmul.f32 %v1381, %v1383
    %v1385 = vadd.f32 %v1381, %v1384
    %vm1386 = vweird.f32 %v1350
    %vm1387 = vweird.f32 %v1381
    %vm1388 = vmor %vm1386, %vm1387
    %v1389 = vsel %vm1388, %v1381, %v1385
    %v1390 = vand.u32 2147483647, %v1350
    %vm1391 = vcmp.eq.f32.partialorder %v1390, 8.507059e+37
    %v1392 = vand.u32 %v1350, 2147483648
    %v1393 = vor.u32 1.1754944e-38, %v1392
    %v1394 = vsel %vm1391, %v1393, %v1389
    %v1395 = vmul.f32 1.0, %v1394
    %v1396 = vtanh.pop %v1338
    %v1397 = vmul.f32 %v1380, %v1279
    %v1398 = vmul.f32 %v1365, %v1396
    %v1399 = vadd.f32 %v1397, %v1398
    %v1400 = vtanh.pop %v1399
    %v1401 = vmul.f32 %v1395, %v1400
    %v1402 = vld [vmem:[%s4] sm:$0xff]
    %v1403 = vld [vmem:[%s4 + $0x8] sm:$0xff]
    %v1404 = vld [vmem:[%s4 + $0x10] sm:$0xff]
    %v1405 = vld [vmem:[%s4 + $0x18] sm:$0xff]
    %v1406 = vld [vmem:[%s4 + $0x20] sm:$0xff]
    %v1407 = vld [vmem:[%s4 + $0x28] sm:$0xff]
    %v1408 = vld [vmem:[%s4 + $0x30] sm:$0xff]
    %v1409 = vld [vmem:[%s4 + $0x38] sm:$0xff]
    %v1410 = vld [vmem:[%s4 + $0x40] sm:$0xff]
    %v1411 = vld [vmem:[%s4 + $0x48] sm:$0xff]
    %v1412 = vld [vmem:[%s4 + $0x50] sm:$0xff]
    %v1413 = vld [vmem:[%s4 + $0x58] sm:$0xff]
    %v1414 = vld [vmem:[%s4 + $0x60] sm:$0xff]
    %v1415 = vld [vmem:[%s4 + $0x68] sm:$0xff]
    %v1416 = vld [vmem:[%s4 + $0x70] sm:$0xff]
    %v1417 = vld [vmem:[%s4 + $0x78] sm:$0xff]
    %v1418 = vld [vmem:[%s5] sm:$0x1]
    %v1420 = vperm.slane %v1418, 0
    %1422 = vmatpush.msra.mxu0 %v1417
    %1423 = vmatpush.msra.mxu0 %v1416
    %1424 = vmatpush.msra.mxu0 %v1415
    %1425 = vmatpush.msra.mxu0 %v1414
    %1426 = vmatpush.msra.mxu0 %v1413
    %1427 = vmatpush.msra.mxu0 %v1412
    %1428 = vmatpush.msra.mxu0 %v1411
    %1429 = vmatpush.msra.mxu0 %v1410
    %1430 = vmatpush.msra.mxu0 %v1409
    %1431 = vmatpush.msra.mxu0 %v1408
    %1432 = vmatpush.msra.mxu0 %v1407
    %1433 = vmatpush.msra.mxu0 %v1406
    %1434 = vmatpush.msra.mxu0 %v1405
    %1435 = vmatpush.msra.mxu0 %v1404
    %1436 = vmatpush.msra.mxu0 %v1403
    %1437 = vmatpush.msra.mxu0 %v1402
    %1438 = vmatmul.f32.gmra.mxu0 %v1401
    %v1439 = vpop.f32.mrf.mxu0
    %v1440 = vadd.f32 %v1420, %v1439
    %1441 = vdwg.mxu0
    %v1442 = vxor.u32 %v1440, 2147483648
    %v1443 = vmul.f32 %v1442, 1.442695
    %v1444 = vpow.pop %v1443
    %v1445 = vadd.f32 %v1444, 1.0
    %v1446 = vrcp.pop %v1445
    %v1447 = vmul.f32 %v1445, %v1446
    %v1448 = vsub.f32 1.0, %v1447
    %v1449 = vmul.f32 %v1446, %v1448
    %v1450 = vadd.f32 %v1446, %v1449
    %vm1451 = vweird.f32 %v1445
    %vm1452 = vweird.f32 %v1446
    %vm1453 = vmor %vm1451, %vm1452
    %v1454 = vsel %vm1453, %v1446, %v1450
    %v1455 = vand.u32 2147483647, %v1445
    %vm1456 = vcmp.eq.f32.partialorder %v1455, 8.507059e+37
    %v1457 = vand.u32 %v1445, 2147483648
    %v1458 = vor.u32 1.1754944e-38, %v1457
    %v1459 = vsel %vm1456, %v1458, %v1454
    %v1460 = vmul.f32 1.0, %v1459
    %vm1461 = vcmask 31744
    %1462 = vst.msk [vmem:[%s6] sm:$0xff] %vm1461, %v1460
    // Predicated region
    $region30: #{tpu_custom_call.1} parent=1 // pred_check
      _
    $region31: #{tpu_custom_call.1} parent=1 // pred_check_branch
      %1464 = sbr.rel (0) target = $region33
    $region32: #{tpu_custom_call.1} parent=1 // pred_region
      _
    $region33: #{tpu_custom_call.1} parent=1 // pred_fallthru
      _
    // Predicated region
    $region34: #{tpu_custom_call.1} parent=1 // pred_check
      _
    $region35: #{tpu_custom_call.1} parent=1 // pred_check_branch
      %1466 = sbr.rel (0) target = $region37
    $region36: #{tpu_custom_call.1} parent=1 // pred_region
      _
    $region37: #{tpu_custom_call.1} parent=1 // pred_fallthru
      _
    %1467 = vsyncpa [#allocation3], 1

</llo_original>
